<compile_context>
chip_gen: v7x
topology: tpu7x:2x2x1
jax: 0.10.0
libtpu: 0.0.40
codegen_flags: <defaults>
</compile_context>

<pallas_src>
import functools

import jax
import jax.numpy as jnp
from jax.experimental import pallas as pl
from jax.experimental.pallas import tpu as pltpu


_LANE = 128
_SUBLANE = 8
_VMEM_LIMIT_BYTES = 48 * 1024 * 1024      # safe on v5e/v6e (128 MiB) and v7x (64 MiB)
_VMEM_TILE_BUDGET = 40 * 1024 * 1024      # headroom under the scoped limit


def _round_up(x, m):
    return ((x + m - 1) // m) * m


# ----------------------------------------------------------------------------
# Pass 1: im2col matmul fused with per-tile BN partial statistics.
#   patches (tm, tk) @ weight (tk, Coutp), accumulated over the K grid axis.
#   On the last K step the tile result is stored and its per-channel sum /
#   sum-of-squares (for train-mode BatchNorm) are emitted as partials.
# ----------------------------------------------------------------------------
def _conv_stats_kernel(p_ref, w_ref, y_ref, s_ref, ss_ref, acc_ref):
    k = pl.program_id(1)

    @pl.when(k == 0)
    def _():
        acc_ref[...] = jnp.zeros_like(acc_ref)

    acc_ref[...] += jnp.dot(p_ref[...], w_ref[...],
                            preferred_element_type=jnp.float32)

    @pl.when(k == pl.num_programs(1) - 1)
    def _():
        y = acc_ref[...]
        y_ref[...] = y.astype(y_ref.dtype)
        # Zero-padded rows (M..Mpad) contribute 0 to both sums, so no masking
        # is needed (the wrapper divides by the true M).
        s = jnp.sum(y, axis=0, keepdims=True)          # (1, Coutp)
        ss = jnp.sum(y * y, axis=0, keepdims=True)     # (1, Coutp)
        s_ref[...] = jnp.broadcast_to(s, s_ref.shape)
        ss_ref[...] = jnp.broadcast_to(ss, ss_ref.shape)


# ----------------------------------------------------------------------------
# Pass 2: apply BN as a precomputed per-channel scale/shift + activation.
# ----------------------------------------------------------------------------
def _bn_act_kernel(y_ref, scale_ref, shift_ref, o_ref, *, neg_slope):
    z = y_ref[...] * scale_ref[...] + shift_ref[...]
    o_ref[...] = jnp.where(z > 0, z, neg_slope * z).astype(o_ref.dtype)


# ----------------------------------------------------------------------------
# Wrapper
# ----------------------------------------------------------------------------
def conv2d_bn_act(x, weight, bias, gamma, beta, *, activation="relu", eps=1e-5):
    """x: (B, Cin, H, W) NCHW float32.  weight: (Cout, Cin, K, K).
       Returns (B, Cout, Ho, Wo) NCHW, Ho = H-K+1, Wo = W-K+1 (VALID conv)."""
    del bias  # Train-mode BatchNorm subtracts the channel mean -> conv bias cancels.

    B, Cin, H, W = x.shape
    Cout, _, K, _ = weight.shape
    Ho, Wo = H - K + 1, W - K + 1
    Kdim = Cin * K * K
    M = B * Ho * Wo

    # --- im2col glue (plain JAX layout plumbing). K == 1 is the DGCNN case.
    if K == 1:
        patches = x.transpose(0, 2, 3, 1).reshape(M, Kdim)
    else:
        cols = [x[:, :, i:i + Ho, j:j + Wo] for i in range(K) for j in range(K)]
        patches = jnp.stack(cols, axis=2).reshape(B, Kdim, Ho, Wo)
        patches = patches.transpose(0, 2, 3, 1).reshape(M, Kdim)
    patches = patches.astype(jnp.float32)
    w2d = weight.reshape(Cout, Kdim).T.astype(jnp.float32)        # (Kdim, Cout)

    # --- lane-dense output channels.
    Coutp = _round_up(Cout, _LANE)

    # --- K-axis tiling only when Kdim is large.
    if Kdim <= 2048:
        tk, Kpad = Kdim, Kdim
    else:
        tk = 512
        Kpad = _round_up(Kdim, tk)

    # --- pick tm (multiple of 128) under an explicit VMEM budget.
    def _fits(tm):
        need = (2 * tm * tk * 4                 # patches, double buffered
                + 2 * tk * Coutp * 4            # weights
                + 2 * tm * Coutp * 4            # y output
                + 2 * 2 * _SUBLANE * Coutp * 4  # stats outputs
                + tm * Coutp * 4)               # accumulator scratch
        return need <= _VMEM_TILE_BUDGET

    tm = 128
    for cand in (1024, 512, 256, 128):
        if _fits(cand):
            tm = cand
            break
    tm = min(tm, _round_up(M, _LANE))
    Mpad = _round_up(M, tm)
    num_m = Mpad // tm
    num_k = Kpad // tk

    if (Mpad, Kpad) != (M, Kdim):
        patches = jnp.pad(patches, ((0, Mpad - M), (0, Kpad - Kdim)))
    w2d = jnp.pad(w2d, ((0, Kpad - Kdim), (0, Coutp - Cout)))

    # --- Pass 1: conv matmul + BN partial statistics.
    y, s_part, ss_part = pl.pallas_call(
        _conv_stats_kernel,
        out_shape=(
            jax.ShapeDtypeStruct((Mpad, Coutp), jnp.float32),
            jax.ShapeDtypeStruct((num_m * _SUBLANE, Coutp), jnp.float32),
            jax.ShapeDtypeStruct((num_m * _SUBLANE, Coutp), jnp.float32),
        ),
        grid_spec=pltpu.PrefetchScalarGridSpec(
            num_scalar_prefetch=0,
            grid=(num_m, num_k),
            in_specs=[
                pl.BlockSpec((tm, tk), lambda i, k: (i, k)),
                pl.BlockSpec((tk, Coutp), lambda i, k: (k, 0)),
            ],
            out_specs=[
                pl.BlockSpec((tm, Coutp), lambda i, k: (i, 0)),
                pl.BlockSpec((_SUBLANE, Coutp), lambda i, k: (i, 0)),
                pl.BlockSpec((_SUBLANE, Coutp), lambda i, k: (i, 0)),
            ],
            scratch_shapes=[pltpu.VMEM((tm, Coutp), jnp.float32)],
        ),
        compiler_params=pltpu.CompilerParams(
            dimension_semantics=("parallel", "arbitrary"),
            vmem_limit_bytes=_VMEM_LIMIT_BYTES),
    )(patches, w2d)

    # --- finalize BN statistics -> per-channel scale/shift (tiny, plain JAX).
    cnt = jnp.float32(M)
    total_s = jnp.sum(s_part[0::_SUBLANE], axis=0)               # (Coutp,)
    total_ss = jnp.sum(ss_part[0::_SUBLANE], axis=0)
    mean = total_s / cnt
    var = jnp.maximum(total_ss / cnt - mean * mean, 0.0)
    inv = jax.lax.rsqrt(var + eps)
    gamma_p = jnp.pad(gamma.astype(jnp.float32), (0, Coutp - Cout))
    beta_p = jnp.pad(beta.astype(jnp.float32), (0, Coutp - Cout))
    scale = (gamma_p * inv).reshape(1, Coutp)
    shift = (beta_p - mean * gamma_p * inv).reshape(1, Coutp)

    # --- Pass 2: BN apply + activation, M-tiled.
    neg_slope = 0.0 if activation == "relu" else 0.2
    o = pl.pallas_call(
        functools.partial(_bn_act_kernel, neg_slope=neg_slope),
        out_shape=jax.ShapeDtypeStruct((Mpad, Coutp), jnp.float32),
        grid_spec=pltpu.PrefetchScalarGridSpec(
            num_scalar_prefetch=0,
            grid=(num_m,),
            in_specs=[
                pl.BlockSpec((tm, Coutp), lambda i: (i, 0)),
                pl.BlockSpec((1, Coutp), lambda i: (0, 0)),
                pl.BlockSpec((1, Coutp), lambda i: (0, 0)),
            ],
            out_specs=pl.BlockSpec((tm, Coutp), lambda i: (i, 0)),
        ),
        compiler_params=pltpu.CompilerParams(
            dimension_semantics=("parallel",),
            vmem_limit_bytes=_VMEM_LIMIT_BYTES),
    )(y, scale, shift)

    # TODO(synk): at the network level keep activations in (M, Cout)/NHWC and
    # only convert to NCHW at the boundary to avoid a transpose per layer.
    out = o[:M, :Cout].reshape(B, Ho, Wo, Cout).transpose(0, 3, 1, 2)
    return out


# ----------------------------------------------------------------------------
# Pure-JAX reference (includes the conv bias, to verify the cancellation).
# ----------------------------------------------------------------------------
def _reference(x, weight, bias, gamma, beta, *, activation="relu", eps=1e-5):
    y = jax.lax.conv_general_dilated(
        x, weight, window_strides=(1, 1), padding="VALID",
        dimension_numbers=("NCHW", "OIHW", "NCHW"))
    y = y + bias.reshape(1, -1, 1, 1)
    mean = jnp.mean(y, axis=(0, 2, 3), keepdims=True)
    var = jnp.mean((y - mean) ** 2, axis=(0, 2, 3), keepdims=True)
    z = (y - mean) / jnp.sqrt(var + eps)
    z = z * gamma.reshape(1, -1, 1, 1) + beta.reshape(1, -1, 1, 1)
    slope = 0.0 if activation == "relu" else 0.2
    return jnp.where(z > 0, z, slope * z)


if __name__ == "__main__":
    key = jax.random.PRNGKey(0)

    # Case 1: the DGCNN pointwise conv (K=1), ReLU.
    B, Cin, H, W, Cout, K = 2, 4, 16, 16, 8, 1
    kx, kw, kb = jax.random.split(key, 3)
    x = jax.random.normal(kx, (B, Cin, H, W), dtype=jnp.float32)
    weight = 0.1 * jax.random.normal(kw, (Cout, Cin, K, K), dtype=jnp.float32)
    bias = 0.05 * jax.random.normal(kb, (Cout,), dtype=jnp.float32)
    gamma = jnp.ones((Cout,), jnp.float32)     # nn.BatchNorm2d default init
    beta = jnp.zeros((Cout,), jnp.float32)

    out = conv2d_bn_act(x, weight, bias, gamma, beta, activation="relu")
    out = jax.block_until_ready(out)
    ref = _reference(x, weight, bias, gamma, beta, activation="relu")
    assert out.shape == (B, Cout, H - K + 1, W - K + 1)
    assert jnp.max(jnp.abs(out - ref)) < 1e-3, "mismatch vs reference (K=1)"

    # Case 2: K=3 patch conv, LeakyReLU(0.2), odd Cout (exercises lane padding).
    B2, Cin2, H2, W2, Cout2, K2 = 2, 3, 10, 10, 5, 3
    k1, k2, k3 = jax.random.split(jax.random.PRNGKey(1), 3)
    x2 = jax.random.normal(k1, (B2, Cin2, H2, W2), dtype=jnp.float32)
    w2 = 0.1 * jax.random.normal(k2, (Cout2, Cin2, K2, K2), dtype=jnp.float32)
    b2 = 0.05 * jax.random.normal(k3, (Cout2,), dtype=jnp.float32)
    g2 = jnp.ones((Cout2,), jnp.float32)
    be2 = jnp.zeros((Cout2,), jnp.float32)

    out2 = conv2d_bn_act(x2, w2, b2, g2, be2, activation="leakyrelu")
    out2 = jax.block_until_ready(out2)
    ref2 = _reference(x2, w2, b2, g2, be2, activation="leakyrelu")
    assert out2.shape == (B2, Cout2, H2 - K2 + 1, W2 - K2 + 1)
    assert jnp.max(jnp.abs(out2 - ref2)) < 1e-3, "mismatch vs reference (K=3)"

    print("KERNEL_OK")
</pallas_src>

<mosaic_0001>
module attributes {stable_mosaic.version = 11 : i64} {
  func.func @_conv_stats_kernel(%arg0: i32, %arg1: i32, %arg2: memref<512x4xf32, #tpu.memory_space<vmem>>, %arg3: memref<4x128xf32, #tpu.memory_space<vmem>>, %arg4: memref<512x128xf32, #tpu.memory_space<vmem>>, %arg5: memref<8x128xf32, #tpu.memory_space<vmem>>, %arg6: memref<8x128xf32, #tpu.memory_space<vmem>>, %arg7: memref<512x128xf32, #tpu.memory_space<vmem>>) attributes {dimension_semantics = [#tpu.dimension_semantics<parallel>, #tpu.dimension_semantics<arbitrary>], iteration_bounds = array<i64: 1, 1>, scalar_prefetch = 0 : i64, scratch_operands = 1 : i64, tpu.core_type = #tpu.core_type<tc>, window_params = [{transform_indices = @transform_0, window_bounds = array<i64: 512, 4>}, {transform_indices = @transform_1, window_bounds = array<i64: 4, 128>}, {transform_indices = @transform_2, window_bounds = array<i64: 512, 128>}, {transform_indices = @transform_3, window_bounds = array<i64: 8, 128>}, {transform_indices = @transform_4, window_bounds = array<i64: 8, 128>}]} {
    %c0_i32 = arith.constant 0 : i32
    %0 = arith.cmpi eq, %arg1, %c0_i32 : i32
    %1 = arith.extui %0 : i1 to i32
    %c0_i32_0 = arith.constant 0 : i32
    %2 = arith.cmpi ne, %1, %c0_i32_0 : i32
    scf.if %2 {
      %cst_10 = arith.constant 0.000000e+00 : f32
      %12 = vector.broadcast %cst_10 : f32 to vector<512x128xf32>
      %c0_11 = arith.constant 0 : index
      %c0_12 = arith.constant 0 : index
      %13 = vector.load %arg7[%c0_11, %c0_12] : memref<512x128xf32, #tpu.memory_space<vmem>>, vector<512x128xf32>
      tpu.vector_store %arg7[%c0_11, %c0_12], %12 {strides = array<i32>} : memref<512x128xf32, #tpu.memory_space<vmem>>, vector<512x128xf32>,
    } else {
    }
    %c0 = arith.constant 0 : index
    %c0_1 = arith.constant 0 : index
    %3 = vector.load %arg7[%c0, %c0_1] : memref<512x128xf32, #tpu.memory_space<vmem>>, vector<512x128xf32>
    %c0_2 = arith.constant 0 : index
    %c0_3 = arith.constant 0 : index
    %4 = vector.load %arg2[%c0_2, %c0_3] : memref<512x4xf32, #tpu.memory_space<vmem>>, vector<512x4xf32>
    %c0_4 = arith.constant 0 : index
    %c0_5 = arith.constant 0 : index
    %5 = vector.load %arg3[%c0_4, %c0_5] : memref<4x128xf32, #tpu.memory_space<vmem>>, vector<4x128xf32>
    %cst = arith.constant dense<0.000000e+00> : vector<512x128xf32>
    %6 = tpu.matmul %4, %5, %cst {dimension_numbers = #tpu.dot_dimension_numbers<[1], [0], [0], [1], [0, 0, 1, 1], [], []>} : vector<512x4xf32>, vector<4x128xf32>, vector<512x128xf32> -> vector<512x128xf32>
    %7 = arith.addf %3, %6 : vector<512x128xf32>
    %c0_6 = arith.constant 0 : index
    %c0_7 = arith.constant 0 : index
    %8 = vector.load %arg7[%c0_6, %c0_7] : memref<512x128xf32, #tpu.memory_space<vmem>>, vector<512x128xf32>
    tpu.vector_store %arg7[%c0_6, %c0_7], %7 {strides = array<i32>} : memref<512x128xf32, #tpu.memory_space<vmem>>, vector<512x128xf32>,
    %c0_i32_8 = arith.constant 0 : i32
    %9 = arith.cmpi eq, %arg1, %c0_i32_8 : i32
    %10 = arith.extui %9 : i1 to i32
    %c0_i32_9 = arith.constant 0 : i32
    %11 = arith.cmpi ne, %10, %c0_i32_9 : i32
    scf.if %11 {
      %c0_10 = arith.constant 0 : index
      %c0_11 = arith.constant 0 : index
      %12 = vector.load %arg7[%c0_10, %c0_11] : memref<512x128xf32, #tpu.memory_space<vmem>>, vector<512x128xf32>
      %c0_12 = arith.constant 0 : index
      %c0_13 = arith.constant 0 : index
      %13 = vector.load %arg4[%c0_12, %c0_13] : memref<512x128xf32, #tpu.memory_space<vmem>>, vector<512x128xf32>
      tpu.vector_store %arg4[%c0_12, %c0_13], %12 {strides = array<i32>} : memref<512x128xf32, #tpu.memory_space<vmem>>, vector<512x128xf32>,
      %cst_14 = arith.constant dense<0.000000e+00> : vector<128xf32>
      %14 = vector.multi_reduction <add>, %12, %cst_14 [0] : vector<512x128xf32> to vector<128xf32>
      %15 = vector.shape_cast %14 : vector<128xf32> to vector<1x128xf32>
      %16 = arith.mulf %12, %12 : vector<512x128xf32>
      %cst_15 = arith.constant dense<0.000000e+00> : vector<128xf32>
      %17 = vector.multi_reduction <add>, %16, %cst_15 [0] : vector<512x128xf32> to vector<128xf32>
      %18 = vector.shape_cast %17 : vector<128xf32> to vector<1x128xf32>
      %19 = vector.shape_cast %15 : vector<1x128xf32> to vector<1x128xf32>
      %20 = vector.broadcast %19 : vector<1x128xf32> to vector<8x128xf32>
      %c0_16 = arith.constant 0 : index
      %c0_17 = arith.constant 0 : index
      %21 = vector.load %arg5[%c0_16, %c0_17] : memref<8x128xf32, #tpu.memory_space<vmem>>, vector<8x128xf32>
      tpu.vector_store %arg5[%c0_16, %c0_17], %20 {strides = array<i32>} : memref<8x128xf32, #tpu.memory_space<vmem>>, vector<8x128xf32>,
      %22 = vector.shape_cast %18 : vector<1x128xf32> to vector<1x128xf32>
      %23 = vector.broadcast %22 : vector<1x128xf32> to vector<8x128xf32>
      %c0_18 = arith.constant 0 : index
      %c0_19 = arith.constant 0 : index
      %24 = vector.load %arg6[%c0_18, %c0_19] : memref<8x128xf32, #tpu.memory_space<vmem>>, vector<8x128xf32>
      tpu.vector_store %arg6[%c0_18, %c0_19], %23 {strides = array<i32>} : memref<8x128xf32, #tpu.memory_space<vmem>>, vector<8x128xf32>,
    } else {
    }
    return
  }
  func.func @transform_0(%arg0: i32, %arg1: i32) -> (i32, i32) {
    %c0_i32 = arith.constant 0 : i32
    return %arg0, %arg1 : i32, i32
  }
  func.func @transform_1(%arg0: i32, %arg1: i32) -> (i32, i32) {
    %c0_i32 = arith.constant 0 : i32
    %c0_i32_0 = arith.constant 0 : i32
    return %arg1, %c0_i32 : i32, i32
  }
  func.func @transform_2(%arg0: i32, %arg1: i32) -> (i32, i32) {
    %c0_i32 = arith.constant 0 : i32
    %c0_i32_0 = arith.constant 0 : i32
    return %arg0, %c0_i32 : i32, i32
  }
  func.func @transform_3(%arg0: i32, %arg1: i32) -> (i32, i32) {
    %c0_i32 = arith.constant 0 : i32
    %c0_i32_0 = arith.constant 0 : i32
    return %arg0, %c0_i32 : i32, i32
  }
  func.func @transform_4(%arg0: i32, %arg1: i32) -> (i32, i32) {
    %c0_i32 = arith.constant 0 : i32
    %c0_i32_0 = arith.constant 0 : i32
    return %arg0, %c0_i32 : i32, i32
  }
}

</mosaic_0001>

<llo_original>
// kernel: tpu_custom_call.1
$region0: #{tpu_custom_call.1}
  #allocation0 [shape = 'u32[]', space=smem, size = 0x4, offset = 0x4, fixed_abs, tag = 'smem constant byte address 0x4 - core index']
  #allocation1 [shape = 'u32[144,128]{1,0:T(1,128)}', space=vmem, size = 0x12000, scoped, tag = 'internal scratch']
  #allocation2 [shape = 'f32[512,128]{1,0:T(8,128)}', space=vmem, size = 0x40000, scoped, tag = 'scratch operand']
  %s0 = inlined_call_operand.vmem [shape: f32[512,4], index: 0, kind: input, shape index: {}]
  %s1 = inlined_call_operand.vmem [shape: f32[4,128], index: 1, kind: input, shape index: {}]
  %s2 = inlined_call_operand.hbm [shape: f32[512,128], index: 2, kind: output, shape index: {0}]
  %s3 = inlined_call_operand.hbm [shape: f32[8,128], index: 3, kind: output, shape index: {1}]
  %s4 = inlined_call_operand.hbm [shape: f32[8,128], index: 4, kind: output, shape index: {2}]
  %5 = xla_tuple %s2, %s3, %s4
  %s6 = sld [smem:[#allocation0]]
  $region42: #{tpu_custom_call.1} parent=0
    _
  %s8 = ssub.s32 1, %s6
  %s9 = scalar_select 0, %s8, %s6
  $region1: #{tpu_custom_call.1} parent=0
    #allocation3 [shape = 'u8[262144]{0}', space=vmem, size = 0x40000, scoped, tag = 'output window, operand 0, single buffered']
    #allocation4 [shape = 's32[1]{0}', space=sflag, size = 0x4, scoped, tag = 'scoped memory for tpu_custom_call.1']
    #allocation5 [shape = 'u8[4096]{0}', space=vmem, size = 0x1000, scoped, tag = 'output window, operand 1, single buffered']
    #allocation6 [shape = 's32[1]{0}', space=sflag, size = 0x4, scoped, tag = 'scoped memory for tpu_custom_call.1']
    #allocation7 [shape = 'u8[4096]{0}', space=vmem, size = 0x1000, scoped, tag = 'output window, operand 2, single buffered']
    %10 = vsyncpa [#allocation4], 0
    %11 = vsyncpa [#allocation6], 0
    // Predicated region
    $region2: #{tpu_custom_call.1} parent=1 // pred_check
      _
    $region3: #{tpu_custom_call.1} parent=1 // pred_check_branch
      %13 = sbr.rel (0) target = $region5
    $region4: #{tpu_custom_call.1} parent=1 // pred_region
      _
    $region5: #{tpu_custom_call.1} parent=1 // pred_fallthru
      _
    // Predicated region
    $region6: #{tpu_custom_call.1} parent=1 // pred_check
      _
    $region7: #{tpu_custom_call.1} parent=1 // pred_check_branch
      %15 = sbr.rel (0) target = $region9
    $region8: #{tpu_custom_call.1} parent=1 // pred_region
      _
    $region9: #{tpu_custom_call.1} parent=1 // pred_fallthru
      _
    %p16 = scmp.eq.s32.totalorder 0, 0
    // Predicated region
    $region10: #{tpu_custom_call.1} parent=1 // pred_check
      %p17 = pneg %p16
    $region11: #{tpu_custom_call.1} parent=1 // pred_check_branch
      %19 = sbr.rel (%p17) target = $region13
    $region12: #{tpu_custom_call.1} parent=1 // pred_region
      %20 = vst [vmem:[#allocation2] sm:$0xff] 0.0
      %21 = vst [vmem:[#allocation2 + $0x8] sm:$0xff] 0.0
      %22 = vst [vmem:[#allocation2 + $0x10] sm:$0xff] 0.0
      %23 = vst [vmem:[#allocation2 + $0x18] sm:$0xff] 0.0
      %24 = vst [vmem:[#allocation2 + $0x20] sm:$0xff] 0.0
      %25 = vst [vmem:[#allocation2 + $0x28] sm:$0xff] 0.0
      %26 = vst [vmem:[#allocation2 + $0x30] sm:$0xff] 0.0
      %27 = vst [vmem:[#allocation2 + $0x38] sm:$0xff] 0.0
      %28 = vst [vmem:[#allocation2 + $0x40] sm:$0xff] 0.0
      %29 = vst [vmem:[#allocation2 + $0x48] sm:$0xff] 0.0
      %30 = vst [vmem:[#allocation2 + $0x50] sm:$0xff] 0.0
      %31 = vst [vmem:[#allocation2 + $0x58] sm:$0xff] 0.0
      %32 = vst [vmem:[#allocation2 + $0x60] sm:$0xff] 0.0
      %33 = vst [vmem:[#allocation2 + $0x68] sm:$0xff] 0.0
      %34 = vst [vmem:[#allocation2 + $0x70] sm:$0xff] 0.0
      %35 = vst [vmem:[#allocation2 + $0x78] sm:$0xff] 0.0
      %36 = vst [vmem:[#allocation2 + $0x80] sm:$0xff] 0.0
      %37 = vst [vmem:[#allocation2 + $0x88] sm:$0xff] 0.0
      %38 = vst [vmem:[#allocation2 + $0x90] sm:$0xff] 0.0
      %39 = vst [vmem:[#allocation2 + $0x98] sm:$0xff] 0.0
      %40 = vst [vmem:[#allocation2 + $0xa0] sm:$0xff] 0.0
      %41 = vst [vmem:[#allocation2 + $0xa8] sm:$0xff] 0.0
      %42 = vst [vmem:[#allocation2 + $0xb0] sm:$0xff] 0.0
      %43 = vst [vmem:[#allocation2 + $0xb8] sm:$0xff] 0.0
      %44 = vst [vmem:[#allocation2 + $0xc0] sm:$0xff] 0.0
      %45 = vst [vmem:[#allocation2 + $0xc8] sm:$0xff] 0.0
      %46 = vst [vmem:[#allocation2 + $0xd0] sm:$0xff] 0.0
      %47 = vst [vmem:[#allocation2 + $0xd8] sm:$0xff] 0.0
      %48 = vst [vmem:[#allocation2 + $0xe0] sm:$0xff] 0.0
      %49 = vst [vmem:[#allocation2 + $0xe8] sm:$0xff] 0.0
      %50 = vst [vmem:[#allocation2 + $0xf0] sm:$0xff] 0.0
      %51 = vst [vmem:[#allocation2 + $0xf8] sm:$0xff] 0.0
      %52 = vst [vmem:[#allocation2 + $0x100] sm:$0xff] 0.0
      %53 = vst [vmem:[#allocation2 + $0x108] sm:$0xff] 0.0
      %54 = vst [vmem:[#allocation2 + $0x110] sm:$0xff] 0.0
      %55 = vst [vmem:[#allocation2 + $0x118] sm:$0xff] 0.0
      %56 = vst [vmem:[#allocation2 + $0x120] sm:$0xff] 0.0
      %57 = vst [vmem:[#allocation2 + $0x128] sm:$0xff] 0.0
      %58 = vst [vmem:[#allocation2 + $0x130] sm:$0xff] 0.0
      %59 = vst [vmem:[#allocation2 + $0x138] sm:$0xff] 0.0
      %60 = vst [vmem:[#allocation2 + $0x140] sm:$0xff] 0.0
      %61 = vst [vmem:[#allocation2 + $0x148] sm:$0xff] 0.0
      %62 = vst [vmem:[#allocation2 + $0x150] sm:$0xff] 0.0
      %63 = vst [vmem:[#allocation2 + $0x158] sm:$0xff] 0.0
      %64 = vst [vmem:[#allocation2 + $0x160] sm:$0xff] 0.0
      %65 = vst [vmem:[#allocation2 + $0x168] sm:$0xff] 0.0
      %66 = vst [vmem:[#allocation2 + $0x170] sm:$0xff] 0.0
      %67 = vst [vmem:[#allocation2 + $0x178] sm:$0xff] 0.0
      %68 = vst [vmem:[#allocation2 + $0x180] sm:$0xff] 0.0
      %69 = vst [vmem:[#allocation2 + $0x188] sm:$0xff] 0.0
      %70 = vst [vmem:[#allocation2 + $0x190] sm:$0xff] 0.0
      %71 = vst [vmem:[#allocation2 + $0x198] sm:$0xff] 0.0
      %72 = vst [vmem:[#allocation2 + $0x1a0] sm:$0xff] 0.0
      %73 = vst [vmem:[#allocation2 + $0x1a8] sm:$0xff] 0.0
      %74 = vst [vmem:[#allocation2 + $0x1b0] sm:$0xff] 0.0
      %75 = vst [vmem:[#allocation2 + $0x1b8] sm:$0xff] 0.0
      %76 = vst [vmem:[#allocation2 + $0x1c0] sm:$0xff] 0.0
      %77 = vst [vmem:[#allocation2 + $0x1c8] sm:$0xff] 0.0
      %78 = vst [vmem:[#allocation2 + $0x1d0] sm:$0xff] 0.0
      %79 = vst [vmem:[#allocation2 + $0x1d8] sm:$0xff] 0.0
      %80 = vst [vmem:[#allocation2 + $0x1e0] sm:$0xff] 0.0
      %81 = vst [vmem:[#allocation2 + $0x1e8] sm:$0xff] 0.0
      %82 = vst [vmem:[#allocation2 + $0x1f0] sm:$0xff] 0.0
      %83 = vst [vmem:[#allocation2 + $0x1f8] sm:$0xff] 0.0
    $region13: #{tpu_custom_call.1} parent=1 // pred_fallthru
      _
    %v84 = vld [vmem:[#allocation2] sm:$0xff]
    %v85 = vld [vmem:[#allocation2 + $0x8] sm:$0xff]
    %v86 = vld [vmem:[#allocation2 + $0x10] sm:$0xff]
    %v87 = vld [vmem:[#allocation2 + $0x18] sm:$0xff]
    %v88 = vld [vmem:[#allocation2 + $0x20] sm:$0xff]
    %v89 = vld [vmem:[#allocation2 + $0x28] sm:$0xff]
    %v90 = vld [vmem:[#allocation2 + $0x30] sm:$0xff]
    %v91 = vld [vmem:[#allocation2 + $0x38] sm:$0xff]
    %v92 = vld [vmem:[#allocation2 + $0x40] sm:$0xff]
    %v93 = vld [vmem:[#allocation2 + $0x48] sm:$0xff]
    %v94 = vld [vmem:[#allocation2 + $0x50] sm:$0xff]
    %v95 = vld [vmem:[#allocation2 + $0x58] sm:$0xff]
    %v96 = vld [vmem:[#allocation2 + $0x60] sm:$0xff]
    %v97 = vld [vmem:[#allocation2 + $0x68] sm:$0xff]
    %v98 = vld [vmem:[#allocation2 + $0x70] sm:$0xff]
    %v99 = vld [vmem:[#allocation2 + $0x78] sm:$0xff]
    %v100 = vld [vmem:[#allocation2 + $0x80] sm:$0xff]
    %v101 = vld [vmem:[#allocation2 + $0x88] sm:$0xff]
    %v102 = vld [vmem:[#allocation2 + $0x90] sm:$0xff]
    %v103 = vld [vmem:[#allocation2 + $0x98] sm:$0xff]
    %v104 = vld [vmem:[#allocation2 + $0xa0] sm:$0xff]
    %v105 = vld [vmem:[#allocation2 + $0xa8] sm:$0xff]
    %v106 = vld [vmem:[#allocation2 + $0xb0] sm:$0xff]
    %v107 = vld [vmem:[#allocation2 + $0xb8] sm:$0xff]
    %v108 = vld [vmem:[#allocation2 + $0xc0] sm:$0xff]
    %v109 = vld [vmem:[#allocation2 + $0xc8] sm:$0xff]
    %v110 = vld [vmem:[#allocation2 + $0xd0] sm:$0xff]
    %v111 = vld [vmem:[#allocation2 + $0xd8] sm:$0xff]
    %v112 = vld [vmem:[#allocation2 + $0xe0] sm:$0xff]
    %v113 = vld [vmem:[#allocation2 + $0xe8] sm:$0xff]
    %v114 = vld [vmem:[#allocation2 + $0xf0] sm:$0xff]
    %v115 = vld [vmem:[#allocation2 + $0xf8] sm:$0xff]
    %v116 = vld [vmem:[#allocation2 + $0x100] sm:$0xff]
    %v117 = vld [vmem:[#allocation2 + $0x108] sm:$0xff]
    %v118 = vld [vmem:[#allocation2 + $0x110] sm:$0xff]
    %v119 = vld [vmem:[#allocation2 + $0x118] sm:$0xff]
    %v120 = vld [vmem:[#allocation2 + $0x120] sm:$0xff]
    %v121 = vld [vmem:[#allocation2 + $0x128] sm:$0xff]
    %v122 = vld [vmem:[#allocation2 + $0x130] sm:$0xff]
    %v123 = vld [vmem:[#allocation2 + $0x138] sm:$0xff]
    %v124 = vld [vmem:[#allocation2 + $0x140] sm:$0xff]
    %v125 = vld [vmem:[#allocation2 + $0x148] sm:$0xff]
    %v126 = vld [vmem:[#allocation2 + $0x150] sm:$0xff]
    %v127 = vld [vmem:[#allocation2 + $0x158] sm:$0xff]
    %v128 = vld [vmem:[#allocation2 + $0x160] sm:$0xff]
    %v129 = vld [vmem:[#allocation2 + $0x168] sm:$0xff]
    %v130 = vld [vmem:[#allocation2 + $0x170] sm:$0xff]
    %v131 = vld [vmem:[#allocation2 + $0x178] sm:$0xff]
    %v132 = vld [vmem:[#allocation2 + $0x180] sm:$0xff]
    %v133 = vld [vmem:[#allocation2 + $0x188] sm:$0xff]
    %v134 = vld [vmem:[#allocation2 + $0x190] sm:$0xff]
    %v135 = vld [vmem:[#allocation2 + $0x198] sm:$0xff]
    %v136 = vld [vmem:[#allocation2 + $0x1a0] sm:$0xff]
    %v137 = vld [vmem:[#allocation2 + $0x1a8] sm:$0xff]
    %v138 = vld [vmem:[#allocation2 + $0x1b0] sm:$0xff]
    %v139 = vld [vmem:[#allocation2 + $0x1b8] sm:$0xff]
    %v140 = vld [vmem:[#allocation2 + $0x1c0] sm:$0xff]
    %v141 = vld [vmem:[#allocation2 + $0x1c8] sm:$0xff]
    %v142 = vld [vmem:[#allocation2 + $0x1d0] sm:$0xff]
    %v143 = vld [vmem:[#allocation2 + $0x1d8] sm:$0xff]
    %v144 = vld [vmem:[#allocation2 + $0x1e0] sm:$0xff]
    %v145 = vld [vmem:[#allocation2 + $0x1e8] sm:$0xff]
    %v146 = vld [vmem:[#allocation2 + $0x1f0] sm:$0xff]
    %v147 = vld [vmem:[#allocation2 + $0x1f8] sm:$0xff]
    %v148 = vld [vmem:[%s0] sm:$0xff]
    %v149 = vld [vmem:[%s0 + $0x8] sm:$0xff]
    %v150 = vld [vmem:[%s0 + $0x10] sm:$0xff]
    %v151 = vld [vmem:[%s0 + $0x18] sm:$0xff]
    %v152 = vld [vmem:[%s0 + $0x20] sm:$0xff]
    %v153 = vld [vmem:[%s0 + $0x28] sm:$0xff]
    %v154 = vld [vmem:[%s0 + $0x30] sm:$0xff]
    %v155 = vld [vmem:[%s0 + $0x38] sm:$0xff]
    %v156 = vld [vmem:[%s0 + $0x40] sm:$0xff]
    %v157 = vld [vmem:[%s0 + $0x48] sm:$0xff]
    %v158 = vld [vmem:[%s0 + $0x50] sm:$0xff]
    %v159 = vld [vmem:[%s0 + $0x58] sm:$0xff]
    %v160 = vld [vmem:[%s0 + $0x60] sm:$0xff]
    %v161 = vld [vmem:[%s0 + $0x68] sm:$0xff]
    %v162 = vld [vmem:[%s0 + $0x70] sm:$0xff]
    %v163 = vld [vmem:[%s0 + $0x78] sm:$0xff]
    %v164 = vld [vmem:[%s0 + $0x80] sm:$0xff]
    %v165 = vld [vmem:[%s0 + $0x88] sm:$0xff]
    %v166 = vld [vmem:[%s0 + $0x90] sm:$0xff]
    %v167 = vld [vmem:[%s0 + $0x98] sm:$0xff]
    %v168 = vld [vmem:[%s0 + $0xa0] sm:$0xff]
    %v169 = vld [vmem:[%s0 + $0xa8] sm:$0xff]
    %v170 = vld [vmem:[%s0 + $0xb0] sm:$0xff]
    %v171 = vld [vmem:[%s0 + $0xb8] sm:$0xff]
    %v172 = vld [vmem:[%s0 + $0xc0] sm:$0xff]
    %v173 = vld [vmem:[%s0 + $0xc8] sm:$0xff]
    %v174 = vld [vmem:[%s0 + $0xd0] sm:$0xff]
    %v175 = vld [vmem:[%s0 + $0xd8] sm:$0xff]
    %v176 = vld [vmem:[%s0 + $0xe0] sm:$0xff]
    %v177 = vld [vmem:[%s0 + $0xe8] sm:$0xff]
    %v178 = vld [vmem:[%s0 + $0xf0] sm:$0xff]
    %v179 = vld [vmem:[%s0 + $0xf8] sm:$0xff]
    %v180 = vld [vmem:[%s0 + $0x100] sm:$0xff]
    %v181 = vld [vmem:[%s0 + $0x108] sm:$0xff]
    %v182 = vld [vmem:[%s0 + $0x110] sm:$0xff]
    %v183 = vld [vmem:[%s0 + $0x118] sm:$0xff]
    %v184 = vld [vmem:[%s0 + $0x120] sm:$0xff]
    %v185 = vld [vmem:[%s0 + $0x128] sm:$0xff]
    %v186 = vld [vmem:[%s0 + $0x130] sm:$0xff]
    %v187 = vld [vmem:[%s0 + $0x138] sm:$0xff]
    %v188 = vld [vmem:[%s0 + $0x140] sm:$0xff]
    %v189 = vld [vmem:[%s0 + $0x148] sm:$0xff]
    %v190 = vld [vmem:[%s0 + $0x150] sm:$0xff]
    %v191 = vld [vmem:[%s0 + $0x158] sm:$0xff]
    %v192 = vld [vmem:[%s0 + $0x160] sm:$0xff]
    %v193 = vld [vmem:[%s0 + $0x168] sm:$0xff]
    %v194 = vld [vmem:[%s0 + $0x170] sm:$0xff]
    %v195 = vld [vmem:[%s0 + $0x178] sm:$0xff]
    %v196 = vld [vmem:[%s0 + $0x180] sm:$0xff]
    %v197 = vld [vmem:[%s0 + $0x188] sm:$0xff]
    %v198 = vld [vmem:[%s0 + $0x190] sm:$0xff]
    %v199 = vld [vmem:[%s0 + $0x198] sm:$0xff]
    %v200 = vld [vmem:[%s0 + $0x1a0] sm:$0xff]
    %v201 = vld [vmem:[%s0 + $0x1a8] sm:$0xff]
    %v202 = vld [vmem:[%s0 + $0x1b0] sm:$0xff]
    %v203 = vld [vmem:[%s0 + $0x1b8] sm:$0xff]
    %v204 = vld [vmem:[%s0 + $0x1c0] sm:$0xff]
    %v205 = vld [vmem:[%s0 + $0x1c8] sm:$0xff]
    %v206 = vld [vmem:[%s0 + $0x1d0] sm:$0xff]
    %v207 = vld [vmem:[%s0 + $0x1d8] sm:$0xff]
    %v208 = vld [vmem:[%s0 + $0x1e0] sm:$0xff]
    %v209 = vld [vmem:[%s0 + $0x1e8] sm:$0xff]
    %v210 = vld [vmem:[%s0 + $0x1f0] sm:$0xff]
    %v211 = vld [vmem:[%s0 + $0x1f8] sm:$0xff]
    %v212 = vld [vmem:[%s1] sm:$0xf]
    %vm213 = vcmask 31744
    %v215 = vsel %vm213, %v148, 0
    %v218 = vsel %vm213, %v149, 0
    %v221 = vsel %vm213, %v150, 0
    %v224 = vsel %vm213, %v151, 0
    %v227 = vsel %vm213, %v152, 0
    %v230 = vsel %vm213, %v153, 0
    %v233 = vsel %vm213, %v154, 0
    %v236 = vsel %vm213, %v155, 0
    %v239 = vsel %vm213, %v156, 0
    %v242 = vsel %vm213, %v157, 0
    %v245 = vsel %vm213, %v158, 0
    %v248 = vsel %vm213, %v159, 0
    %v251 = vsel %vm213, %v160, 0
    %v254 = vsel %vm213, %v161, 0
    %v257 = vsel %vm213, %v162, 0
    %v260 = vsel %vm213, %v163, 0
    %v263 = vsel %vm213, %v164, 0
    %v266 = vsel %vm213, %v165, 0
    %v269 = vsel %vm213, %v166, 0
    %v272 = vsel %vm213, %v167, 0
    %v275 = vsel %vm213, %v168, 0
    %v278 = vsel %vm213, %v169, 0
    %v281 = vsel %vm213, %v170, 0
    %v284 = vsel %vm213, %v171, 0
    %v287 = vsel %vm213, %v172, 0
    %v290 = vsel %vm213, %v173, 0
    %v293 = vsel %vm213, %v174, 0
    %v296 = vsel %vm213, %v175, 0
    %v299 = vsel %vm213, %v176, 0
    %v302 = vsel %vm213, %v177, 0
    %v305 = vsel %vm213, %v178, 0
    %v308 = vsel %vm213, %v179, 0
    %v311 = vsel %vm213, %v180, 0
    %v314 = vsel %vm213, %v181, 0
    %v317 = vsel %vm213, %v182, 0
    %v320 = vsel %vm213, %v183, 0
    %v323 = vsel %vm213, %v184, 0
    %v326 = vsel %vm213, %v185, 0
    %v329 = vsel %vm213, %v186, 0
    %v332 = vsel %vm213, %v187, 0
    %v335 = vsel %vm213, %v188, 0
    %v338 = vsel %vm213, %v189, 0
    %v341 = vsel %vm213, %v190, 0
    %v344 = vsel %vm213, %v191, 0
    %v347 = vsel %vm213, %v192, 0
    %v350 = vsel %vm213, %v193, 0
    %v353 = vsel %vm213, %v194, 0
    %v356 = vsel %vm213, %v195, 0
    %v359 = vsel %vm213, %v196, 0
    %v362 = vsel %vm213, %v197, 0
    %v365 = vsel %vm213, %v198, 0
    %v368 = vsel %vm213, %v199, 0
    %v371 = vsel %vm213, %v200, 0
    %v374 = vsel %vm213, %v201, 0
    %v377 = vsel %vm213, %v202, 0
    %v380 = vsel %vm213, %v203, 0
    %v383 = vsel %vm213, %v204, 0
    %v386 = vsel %vm213, %v205, 0
    %v389 = vsel %vm213, %v206, 0
    %v392 = vsel %vm213, %v207, 0
    %v395 = vsel %vm213, %v208, 0
    %v398 = vsel %vm213, %v209, 0
    %v401 = vsel %vm213, %v210, 0
    %v404 = vsel %vm213, %v211, 0
    %vm406 = vcmask 1043456
    %v408 = vsel %vm406, %v212, 0
    %410 = vmatprep.subr.mxu0 0.0
    %411 = vmatpush1.msra.mxu0 %v408
    %412 = vmatprep.subr.mxu0 0.0
    %413 = vmatpush1.msra.mxu0 0.0
    %414 = vmatprep.subr.mxu0 0.0
    %415 = vmatpush1.msra.mxu0 0.0
    %416 = vmatprep.subr.mxu0 0.0
    %417 = vmatpush1.msra.mxu0 0.0
    %418 = vmatprep.subr.mxu0 0.0
    %419 = vmatpush1.msra.mxu0 0.0
    %420 = vmatprep.subr.mxu0 0.0
    %421 = vmatpush1.msra.mxu0 0.0
    %422 = vmatprep.subr.mxu0 0.0
    %423 = vmatpush1.msra.mxu0 0.0
    %424 = vmatprep.subr.mxu0 0.0
    %425 = vmatpush1.msra.mxu0 0.0
    %426 = vmatprep.subr.mxu0 0.0
    %427 = vmatpush1.msra.mxu0 0.0
    %428 = vmatprep.subr.mxu0 0.0
    %429 = vmatpush1.msra.mxu0 0.0
    %430 = vmatprep.subr.mxu0 0.0
    %431 = vmatpush1.msra.mxu0 0.0
    %432 = vmatprep.subr.mxu0 0.0
    %433 = vmatpush1.msra.mxu0 0.0
    %434 = vmatprep.subr.mxu0 0.0
    %435 = vmatpush1.msra.mxu0 0.0
    %436 = vmatprep.subr.mxu0 0.0
    %437 = vmatpush1.msra.mxu0 0.0
    %438 = vmatprep.subr.mxu0 0.0
    %439 = vmatpush1.msra.mxu0 0.0
    %440 = vmatprep.subr.mxu0 0.0
    %441 = vmatpush1.msra.mxu0 0.0
    %442 = vmatprep.subr.mxu0 0.0
    %443 = vmatpush1.msra.mxu0 0.0
    %444 = vmatprep.subr.mxu0 0.0
    %445 = vmatpush1.msra.mxu0 0.0
    %446 = vmatprep.subr.mxu0 0.0
    %447 = vmatpush1.msra.mxu0 0.0
    %448 = vmatprep.subr.mxu0 0.0
    %449 = vmatpush1.msra.mxu0 0.0
    %450 = vmatprep.subr.mxu0 0.0
    %451 = vmatpush1.msra.mxu0 0.0
    %452 = vmatprep.subr.mxu0 0.0
    %453 = vmatpush1.msra.mxu0 0.0
    %454 = vmatprep.subr.mxu0 0.0
    %455 = vmatpush1.msra.mxu0 0.0
    %456 = vmatprep.subr.mxu0 0.0
    %457 = vmatpush1.msra.mxu0 0.0
    %458 = vmatprep.subr.mxu0 0.0
    %459 = vmatpush1.msra.mxu0 0.0
    %460 = vmatprep.subr.mxu0 0.0
    %461 = vmatpush1.msra.mxu0 0.0
    %462 = vmatprep.subr.mxu0 0.0
    %463 = vmatpush1.msra.mxu0 0.0
    %464 = vmatprep.subr.mxu0 0.0
    %465 = vmatpush1.msra.mxu0 0.0
    %466 = vmatprep.subr.mxu0 0.0
    %467 = vmatpush1.msra.mxu0 0.0
    %468 = vmatprep.subr.mxu0 0.0
    %469 = vmatpush1.msra.mxu0 0.0
    %470 = vmatprep.subr.mxu0 0.0
    %471 = vmatpush1.msra.mxu0 0.0
    %472 = vmatprep.subr.mxu0 0.0
    %473 = vmatpush1.msra.mxu0 0.0
    %474 = vmatprep.mubr.f32.mxu0 0.0
    %475 = vmatmul.mubr.f32.gmra.mrb[0].mxu0 %v215
    %v476 = vpop.f32.mrb[0].mxu0
    %v477 = vadd.f32 0.0, %v476
    %v478 = vpop.f32.mrb[0].mxu0
    %479 = vmatprep.mubr.f32.mxu0 0.0
    %480 = vmatmul.mubr.f32.gmra.mrb[0].mxu0 %v218
    %v481 = vpop.f32.mrb[0].mxu0
    %v482 = vadd.f32 0.0, %v481
    %v483 = vpop.f32.mrb[0].mxu0
    %484 = vmatprep.mubr.f32.mxu0 0.0
    %485 = vmatmul.mubr.f32.gmra.mrb[0].mxu0 %v221
    %v486 = vpop.f32.mrb[0].mxu0
    %v487 = vadd.f32 0.0, %v486
    %v488 = vpop.f32.mrb[0].mxu0
    %489 = vmatprep.mubr.f32.mxu0 0.0
    %490 = vmatmul.mubr.f32.gmra.mrb[0].mxu0 %v224
    %v491 = vpop.f32.mrb[0].mxu0
    %v492 = vadd.f32 0.0, %v491
    %v493 = vpop.f32.mrb[0].mxu0
    %494 = vmatprep.mubr.f32.mxu0 0.0
    %495 = vmatmul.mubr.f32.gmra.mrb[0].mxu0 %v227
    %v496 = vpop.f32.mrb[0].mxu0
    %v497 = vadd.f32 0.0, %v496
    %v498 = vpop.f32.mrb[0].mxu0
    %499 = vmatprep.mubr.f32.mxu0 0.0
    %500 = vmatmul.mubr.f32.gmra.mrb[0].mxu0 %v230
    %v501 = vpop.f32.mrb[0].mxu0
    %v502 = vadd.f32 0.0, %v501
    %v503 = vpop.f32.mrb[0].mxu0
    %504 = vmatprep.mubr.f32.mxu0 0.0
    %505 = vmatmul.mubr.f32.gmra.mrb[0].mxu0 %v233
    %v506 = vpop.f32.mrb[0].mxu0
    %v507 = vadd.f32 0.0, %v506
    %v508 = vpop.f32.mrb[0].mxu0
    %509 = vmatprep.mubr.f32.mxu0 0.0
    %510 = vmatmul.mubr.f32.gmra.mrb[0].mxu0 %v236
    %v511 = vpop.f32.mrb[0].mxu0
    %v512 = vadd.f32 0.0, %v511
    %v513 = vpop.f32.mrb[0].mxu0
    %514 = vmatprep.mubr.f32.mxu0 0.0
    %515 = vmatmul.mubr.f32.gmra.mrb[0].mxu0 %v239
    %v516 = vpop.f32.mrb[0].mxu0
    %v517 = vadd.f32 0.0, %v516
    %v518 = vpop.f32.mrb[0].mxu0
    %519 = vmatprep.mubr.f32.mxu0 0.0
    %520 = vmatmul.mubr.f32.gmra.mrb[0].mxu0 %v242
    %v521 = vpop.f32.mrb[0].mxu0
    %v522 = vadd.f32 0.0, %v521
    %v523 = vpop.f32.mrb[0].mxu0
    %524 = vmatprep.mubr.f32.mxu0 0.0
    %525 = vmatmul.mubr.f32.gmra.mrb[0].mxu0 %v245
    %v526 = vpop.f32.mrb[0].mxu0
    %v527 = vadd.f32 0.0, %v526
    %v528 = vpop.f32.mrb[0].mxu0
    %529 = vmatprep.mubr.f32.mxu0 0.0
    %530 = vmatmul.mubr.f32.gmra.mrb[0].mxu0 %v248
    %v531 = vpop.f32.mrb[0].mxu0
    %v532 = vadd.f32 0.0, %v531
    %v533 = vpop.f32.mrb[0].mxu0
    %534 = vmatprep.mubr.f32.mxu0 0.0
    %535 = vmatmul.mubr.f32.gmra.mrb[0].mxu0 %v251
    %v536 = vpop.f32.mrb[0].mxu0
    %v537 = vadd.f32 0.0, %v536
    %v538 = vpop.f32.mrb[0].mxu0
    %539 = vmatprep.mubr.f32.mxu0 0.0
    %540 = vmatmul.mubr.f32.gmra.mrb[0].mxu0 %v254
    %v541 = vpop.f32.mrb[0].mxu0
    %v542 = vadd.f32 0.0, %v541
    %v543 = vpop.f32.mrb[0].mxu0
    %544 = vmatprep.mubr.f32.mxu0 0.0
    %545 = vmatmul.mubr.f32.gmra.mrb[0].mxu0 %v257
    %v546 = vpop.f32.mrb[0].mxu0
    %v547 = vadd.f32 0.0, %v546
    %v548 = vpop.f32.mrb[0].mxu0
    %549 = vmatprep.mubr.f32.mxu0 0.0
    %550 = vmatmul.mubr.f32.gmra.mrb[0].mxu0 %v260
    %v551 = vpop.f32.mrb[0].mxu0
    %v552 = vadd.f32 0.0, %v551
    %v553 = vpop.f32.mrb[0].mxu0
    %554 = vmatprep.mubr.f32.mxu0 0.0
    %555 = vmatmul.mubr.f32.gmra.mrb[0].mxu0 %v263
    %v556 = vpop.f32.mrb[0].mxu0
    %v557 = vadd.f32 0.0, %v556
    %v558 = vpop.f32.mrb[0].mxu0
    %559 = vmatprep.mubr.f32.mxu0 0.0
    %560 = vmatmul.mubr.f32.gmra.mrb[0].mxu0 %v266
    %v561 = vpop.f32.mrb[0].mxu0
    %v562 = vadd.f32 0.0, %v561
    %v563 = vpop.f32.mrb[0].mxu0
    %564 = vmatprep.mubr.f32.mxu0 0.0
    %565 = vmatmul.mubr.f32.gmra.mrb[0].mxu0 %v269
    %v566 = vpop.f32.mrb[0].mxu0
    %v567 = vadd.f32 0.0, %v566
    %v568 = vpop.f32.mrb[0].mxu0
    %569 = vmatprep.mubr.f32.mxu0 0.0
    %570 = vmatmul.mubr.f32.gmra.mrb[0].mxu0 %v272
    %v571 = vpop.f32.mrb[0].mxu0
    %v572 = vadd.f32 0.0, %v571
    %v573 = vpop.f32.mrb[0].mxu0
    %574 = vmatprep.mubr.f32.mxu0 0.0
    %575 = vmatmul.mubr.f32.gmra.mrb[0].mxu0 %v275
    %v576 = vpop.f32.mrb[0].mxu0
    %v577 = vadd.f32 0.0, %v576
    %v578 = vpop.f32.mrb[0].mxu0
    %579 = vmatprep.mubr.f32.mxu0 0.0
    %580 = vmatmul.mubr.f32.gmra.mrb[0].mxu0 %v278
    %v581 = vpop.f32.mrb[0].mxu0
    %v582 = vadd.f32 0.0, %v581
    %v583 = vpop.f32.mrb[0].mxu0
    %584 = vmatprep.mubr.f32.mxu0 0.0
    %585 = vmatmul.mubr.f32.gmra.mrb[0].mxu0 %v281
    %v586 = vpop.f32.mrb[0].mxu0
    %v587 = vadd.f32 0.0, %v586
    %v588 = vpop.f32.mrb[0].mxu0
    %589 = vmatprep.mubr.f32.mxu0 0.0
    %590 = vmatmul.mubr.f32.gmra.mrb[0].mxu0 %v284
    %v591 = vpop.f32.mrb[0].mxu0
    %v592 = vadd.f32 0.0, %v591
    %v593 = vpop.f32.mrb[0].mxu0
    %594 = vmatprep.mubr.f32.mxu0 0.0
    %595 = vmatmul.mubr.f32.gmra.mrb[0].mxu0 %v287
    %v596 = vpop.f32.mrb[0].mxu0
    %v597 = vadd.f32 0.0, %v596
    %v598 = vpop.f32.mrb[0].mxu0
    %599 = vmatprep.mubr.f32.mxu0 0.0
    %600 = vmatmul.mubr.f32.gmra.mrb[0].mxu0 %v290
    %v601 = vpop.f32.mrb[0].mxu0
    %v602 = vadd.f32 0.0, %v601
    %v603 = vpop.f32.mrb[0].mxu0
    %604 = vmatprep.mubr.f32.mxu0 0.0
    %605 = vmatmul.mubr.f32.gmra.mrb[0].mxu0 %v293
    %v606 = vpop.f32.mrb[0].mxu0
    %v607 = vadd.f32 0.0, %v606
    %v608 = vpop.f32.mrb[0].mxu0
    %609 = vmatprep.mubr.f32.mxu0 0.0
    %610 = vmatmul.mubr.f32.gmra.mrb[0].mxu0 %v296
    %v611 = vpop.f32.mrb[0].mxu0
    %v612 = vadd.f32 0.0, %v611
    %v613 = vpop.f32.mrb[0].mxu0
    %614 = vmatprep.mubr.f32.mxu0 0.0
    %615 = vmatmul.mubr.f32.gmra.mrb[0].mxu0 %v299
    %v616 = vpop.f32.mrb[0].mxu0
    %v617 = vadd.f32 0.0, %v616
    %v618 = vpop.f32.mrb[0].mxu0
    %619 = vmatprep.mubr.f32.mxu0 0.0
    %620 = vmatmul.mubr.f32.gmra.mrb[0].mxu0 %v302
    %v621 = vpop.f32.mrb[0].mxu0
    %v622 = vadd.f32 0.0, %v621
    %v623 = vpop.f32.mrb[0].mxu0
    %624 = vmatprep.mubr.f32.mxu0 0.0
    %625 = vmatmul.mubr.f32.gmra.mrb[0].mxu0 %v305
    %v626 = vpop.f32.mrb[0].mxu0
    %v627 = vadd.f32 0.0, %v626
    %v628 = vpop.f32.mrb[0].mxu0
    %629 = vmatprep.mubr.f32.mxu0 0.0
    %630 = vmatmul.mubr.f32.gmra.mrb[0].mxu0 %v308
    %v631 = vpop.f32.mrb[0].mxu0
    %v632 = vadd.f32 0.0, %v631
    %v633 = vpop.f32.mrb[0].mxu0
    %634 = vmatprep.mubr.f32.mxu0 0.0
    %635 = vmatmul.mubr.f32.gmra.mrb[0].mxu0 %v311
    %v636 = vpop.f32.mrb[0].mxu0
    %v637 = vadd.f32 0.0, %v636
    %v638 = vpop.f32.mrb[0].mxu0
    %639 = vmatprep.mubr.f32.mxu0 0.0
    %640 = vmatmul.mubr.f32.gmra.mrb[0].mxu0 %v314
    %v641 = vpop.f32.mrb[0].mxu0
    %v642 = vadd.f32 0.0, %v641
    %v643 = vpop.f32.mrb[0].mxu0
    %644 = vmatprep.mubr.f32.mxu0 0.0
    %645 = vmatmul.mubr.f32.gmra.mrb[0].mxu0 %v317
    %v646 = vpop.f32.mrb[0].mxu0
    %v647 = vadd.f32 0.0, %v646
    %v648 = vpop.f32.mrb[0].mxu0
    %649 = vmatprep.mubr.f32.mxu0 0.0
    %650 = vmatmul.mubr.f32.gmra.mrb[0].mxu0 %v320
    %v651 = vpop.f32.mrb[0].mxu0
    %v652 = vadd.f32 0.0, %v651
    %v653 = vpop.f32.mrb[0].mxu0
    %654 = vmatprep.mubr.f32.mxu0 0.0
    %655 = vmatmul.mubr.f32.gmra.mrb[0].mxu0 %v323
    %v656 = vpop.f32.mrb[0].mxu0
    %v657 = vadd.f32 0.0, %v656
    %v658 = vpop.f32.mrb[0].mxu0
    %659 = vmatprep.mubr.f32.mxu0 0.0
    %660 = vmatmul.mubr.f32.gmra.mrb[0].mxu0 %v326
    %v661 = vpop.f32.mrb[0].mxu0
    %v662 = vadd.f32 0.0, %v661
    %v663 = vpop.f32.mrb[0].mxu0
    %664 = vmatprep.mubr.f32.mxu0 0.0
    %665 = vmatmul.mubr.f32.gmra.mrb[0].mxu0 %v329
    %v666 = vpop.f32.mrb[0].mxu0
    %v667 = vadd.f32 0.0, %v666
    %v668 = vpop.f32.mrb[0].mxu0
    %669 = vmatprep.mubr.f32.mxu0 0.0
    %670 = vmatmul.mubr.f32.gmra.mrb[0].mxu0 %v332
    %v671 = vpop.f32.mrb[0].mxu0
    %v672 = vadd.f32 0.0, %v671
    %v673 = vpop.f32.mrb[0].mxu0
    %674 = vmatprep.mubr.f32.mxu0 0.0
    %675 = vmatmul.mubr.f32.gmra.mrb[0].mxu0 %v335
    %v676 = vpop.f32.mrb[0].mxu0
    %v677 = vadd.f32 0.0, %v676
    %v678 = vpop.f32.mrb[0].mxu0
    %679 = vmatprep.mubr.f32.mxu0 0.0
    %680 = vmatmul.mubr.f32.gmra.mrb[0].mxu0 %v338
    %v681 = vpop.f32.mrb[0].mxu0
    %v682 = vadd.f32 0.0, %v681
    %v683 = vpop.f32.mrb[0].mxu0
    %684 = vmatprep.mubr.f32.mxu0 0.0
    %685 = vmatmul.mubr.f32.gmra.mrb[0].mxu0 %v341
    %v686 = vpop.f32.mrb[0].mxu0
    %v687 = vadd.f32 0.0, %v686
    %v688 = vpop.f32.mrb[0].mxu0
    %689 = vmatprep.mubr.f32.mxu0 0.0
    %690 = vmatmul.mubr.f32.gmra.mrb[0].mxu0 %v344
    %v691 = vpop.f32.mrb[0].mxu0
    %v692 = vadd.f32 0.0, %v691
    %v693 = vpop.f32.mrb[0].mxu0
    %694 = vmatprep.mubr.f32.mxu0 0.0
    %695 = vmatmul.mubr.f32.gmra.mrb[0].mxu0 %v347
    %v696 = vpop.f32.mrb[0].mxu0
    %v697 = vadd.f32 0.0, %v696
    %v698 = vpop.f32.mrb[0].mxu0
    %699 = vmatprep.mubr.f32.mxu0 0.0
    %700 = vmatmul.mubr.f32.gmra.mrb[0].mxu0 %v350
    %v701 = vpop.f32.mrb[0].mxu0
    %v702 = vadd.f32 0.0, %v701
    %v703 = vpop.f32.mrb[0].mxu0
    %704 = vmatprep.mubr.f32.mxu0 0.0
    %705 = vmatmul.mubr.f32.gmra.mrb[0].mxu0 %v353
    %v706 = vpop.f32.mrb[0].mxu0
    %v707 = vadd.f32 0.0, %v706
    %v708 = vpop.f32.mrb[0].mxu0
    %709 = vmatprep.mubr.f32.mxu0 0.0
    %710 = vmatmul.mubr.f32.gmra.mrb[0].mxu0 %v356
    %v711 = vpop.f32.mrb[0].mxu0
    %v712 = vadd.f32 0.0, %v711
    %v713 = vpop.f32.mrb[0].mxu0
    %714 = vmatprep.mubr.f32.mxu0 0.0
    %715 = vmatmul.mubr.f32.gmra.mrb[0].mxu0 %v359
    %v716 = vpop.f32.mrb[0].mxu0
    %v717 = vadd.f32 0.0, %v716
    %v718 = vpop.f32.mrb[0].mxu0
    %719 = vmatprep.mubr.f32.mxu0 0.0
    %720 = vmatmul.mubr.f32.gmra.mrb[0].mxu0 %v362
    %v721 = vpop.f32.mrb[0].mxu0
    %v722 = vadd.f32 0.0, %v721
    %v723 = vpop.f32.mrb[0].mxu0
    %724 = vmatprep.mubr.f32.mxu0 0.0
    %725 = vmatmul.mubr.f32.gmra.mrb[0].mxu0 %v365
    %v726 = vpop.f32.mrb[0].mxu0
    %v727 = vadd.f32 0.0, %v726
    %v728 = vpop.f32.mrb[0].mxu0
    %729 = vmatprep.mubr.f32.mxu0 0.0
    %730 = vmatmul.mubr.f32.gmra.mrb[0].mxu0 %v368
    %v731 = vpop.f32.mrb[0].mxu0
    %v732 = vadd.f32 0.0, %v731
    %v733 = vpop.f32.mrb[0].mxu0
    %734 = vmatprep.mubr.f32.mxu0 0.0
    %735 = vmatmul.mubr.f32.gmra.mrb[0].mxu0 %v371
    %v736 = vpop.f32.mrb[0].mxu0
    %v737 = vadd.f32 0.0, %v736
    %v738 = vpop.f32.mrb[0].mxu0
    %739 = vmatprep.mubr.f32.mxu0 0.0
    %740 = vmatmul.mubr.f32.gmra.mrb[0].mxu0 %v374
    %v741 = vpop.f32.mrb[0].mxu0
    %v742 = vadd.f32 0.0, %v741
    %v743 = vpop.f32.mrb[0].mxu0
    %744 = vmatprep.mubr.f32.mxu0 0.0
    %745 = vmatmul.mubr.f32.gmra.mrb[0].mxu0 %v377
    %v746 = vpop.f32.mrb[0].mxu0
    %v747 = vadd.f32 0.0, %v746
    %v748 = vpop.f32.mrb[0].mxu0
    %749 = vmatprep.mubr.f32.mxu0 0.0
    %750 = vmatmul.mubr.f32.gmra.mrb[0].mxu0 %v380
    %v751 = vpop.f32.mrb[0].mxu0
    %v752 = vadd.f32 0.0, %v751
    %v753 = vpop.f32.mrb[0].mxu0
    %754 = vmatprep.mubr.f32.mxu0 0.0
    %755 = vmatmul.mubr.f32.gmra.mrb[0].mxu0 %v383
    %v756 = vpop.f32.mrb[0].mxu0
    %v757 = vadd.f32 0.0, %v756
    %v758 = vpop.f32.mrb[0].mxu0
    %759 = vmatprep.mubr.f32.mxu0 0.0
    %760 = vmatmul.mubr.f32.gmra.mrb[0].mxu0 %v386
    %v761 = vpop.f32.mrb[0].mxu0
    %v762 = vadd.f32 0.0, %v761
    %v763 = vpop.f32.mrb[0].mxu0
    %764 = vmatprep.mubr.f32.mxu0 0.0
    %765 = vmatmul.mubr.f32.gmra.mrb[0].mxu0 %v389
    %v766 = vpop.f32.mrb[0].mxu0
    %v767 = vadd.f32 0.0, %v766
    %v768 = vpop.f32.mrb[0].mxu0
    %769 = vmatprep.mubr.f32.mxu0 0.0
    %770 = vmatmul.mubr.f32.gmra.mrb[0].mxu0 %v392
    %v771 = vpop.f32.mrb[0].mxu0
    %v772 = vadd.f32 0.0, %v771
    %v773 = vpop.f32.mrb[0].mxu0
    %774 = vmatprep.mubr.f32.mxu0 0.0
    %775 = vmatmul.mubr.f32.gmra.mrb[0].mxu0 %v395
    %v776 = vpop.f32.mrb[0].mxu0
    %v777 = vadd.f32 0.0, %v776
    %v778 = vpop.f32.mrb[0].mxu0
    %779 = vmatprep.mubr.f32.mxu0 0.0
    %780 = vmatmul.mubr.f32.gmra.mrb[0].mxu0 %v398
    %v781 = vpop.f32.mrb[0].mxu0
    %v782 = vadd.f32 0.0, %v781
    %v783 = vpop.f32.mrb[0].mxu0
    %784 = vmatprep.mubr.f32.mxu0 0.0
    %785 = vmatmul.mubr.f32.gmra.mrb[0].mxu0 %v401
    %v786 = vpop.f32.mrb[0].mxu0
    %v787 = vadd.f32 0.0, %v786
    %v788 = vpop.f32.mrb[0].mxu0
    %789 = vmatprep.mubr.f32.mxu0 0.0
    %790 = vmatmul.mubr.f32.gmra.mrb[0].mxu0 %v404
    %v791 = vpop.f32.mrb[0].mxu0
    %v792 = vadd.f32 0.0, %v791
    %v793 = vpop.f32.mrb[0].mxu0
    %794 = vdwg.mxu0
    %v795 = vadd.f32 %v84, %v477
    %v796 = vadd.f32 %v85, %v482
    %v797 = vadd.f32 %v86, %v487
    %v798 = vadd.f32 %v87, %v492
    %v799 = vadd.f32 %v88, %v497
    %v800 = vadd.f32 %v89, %v502
    %v801 = vadd.f32 %v90, %v507
    %v802 = vadd.f32 %v91, %v512
    %v803 = vadd.f32 %v92, %v517
    %v804 = vadd.f32 %v93, %v522
    %v805 = vadd.f32 %v94, %v527
    %v806 = vadd.f32 %v95, %v532
    %v807 = vadd.f32 %v96, %v537
    %v808 = vadd.f32 %v97, %v542
    %v809 = vadd.f32 %v98, %v547
    %v810 = vadd.f32 %v99, %v552
    %v811 = vadd.f32 %v100, %v557
    %v812 = vadd.f32 %v101, %v562
    %v813 = vadd.f32 %v102, %v567
    %v814 = vadd.f32 %v103, %v572
    %v815 = vadd.f32 %v104, %v577
    %v816 = vadd.f32 %v105, %v582
    %v817 = vadd.f32 %v106, %v587
    %v818 = vadd.f32 %v107, %v592
    %v819 = vadd.f32 %v108, %v597
    %v820 = vadd.f32 %v109, %v602
    %v821 = vadd.f32 %v110, %v607
    %v822 = vadd.f32 %v111, %v612
    %v823 = vadd.f32 %v112, %v617
    %v824 = vadd.f32 %v113, %v622
    %v825 = vadd.f32 %v114, %v627
    %v826 = vadd.f32 %v115, %v632
    %v827 = vadd.f32 %v116, %v637
    %v828 = vadd.f32 %v117, %v642
    %v829 = vadd.f32 %v118, %v647
    %v830 = vadd.f32 %v119, %v652
    %v831 = vadd.f32 %v120, %v657
    %v832 = vadd.f32 %v121, %v662
    %v833 = vadd.f32 %v122, %v667
    %v834 = vadd.f32 %v123, %v672
    %v835 = vadd.f32 %v124, %v677
    %v836 = vadd.f32 %v125, %v682
    %v837 = vadd.f32 %v126, %v687
    %v838 = vadd.f32 %v127, %v692
    %v839 = vadd.f32 %v128, %v697
    %v840 = vadd.f32 %v129, %v702
    %v841 = vadd.f32 %v130, %v707
    %v842 = vadd.f32 %v131, %v712
    %v843 = vadd.f32 %v132, %v717
    %v844 = vadd.f32 %v133, %v722
    %v845 = vadd.f32 %v134, %v727
    %v846 = vadd.f32 %v135, %v732
    %v847 = vadd.f32 %v136, %v737
    %v848 = vadd.f32 %v137, %v742
    %v849 = vadd.f32 %v138, %v747
    %v850 = vadd.f32 %v139, %v752
    %v851 = vadd.f32 %v140, %v757
    %v852 = vadd.f32 %v141, %v762
    %v853 = vadd.f32 %v142, %v767
    %v854 = vadd.f32 %v143, %v772
    %v855 = vadd.f32 %v144, %v777
    %v856 = vadd.f32 %v145, %v782
    %v857 = vadd.f32 %v146, %v787
    %v858 = vadd.f32 %v147, %v792
    %859 = vst [vmem:[#allocation2] sm:$0xff] %v795
    %860 = vst [vmem:[#allocation2 + $0x8] sm:$0xff] %v796
    %861 = vst [vmem:[#allocation2 + $0x10] sm:$0xff] %v797
    %862 = vst [vmem:[#allocation2 + $0x18] sm:$0xff] %v798
    %863 = vst [vmem:[#allocation2 + $0x20] sm:$0xff] %v799
    %864 = vst [vmem:[#allocation2 + $0x28] sm:$0xff] %v800
    %865 = vst [vmem:[#allocation2 + $0x30] sm:$0xff] %v801
    %866 = vst [vmem:[#allocation2 + $0x38] sm:$0xff] %v802
    %867 = vst [vmem:[#allocation2 + $0x40] sm:$0xff] %v803
    %868 = vst [vmem:[#allocation2 + $0x48] sm:$0xff] %v804
    %869 = vst [vmem:[#allocation2 + $0x50] sm:$0xff] %v805
    %870 = vst [vmem:[#allocation2 + $0x58] sm:$0xff] %v806
    %871 = vst [vmem:[#allocation2 + $0x60] sm:$0xff] %v807
    %872 = vst [vmem:[#allocation2 + $0x68] sm:$0xff] %v808
    %873 = vst [vmem:[#allocation2 + $0x70] sm:$0xff] %v809
    %874 = vst [vmem:[#allocation2 + $0x78] sm:$0xff] %v810
    %875 = vst [vmem:[#allocation2 + $0x80] sm:$0xff] %v811
    %876 = vst [vmem:[#allocation2 + $0x88] sm:$0xff] %v812
    %877 = vst [vmem:[#allocation2 + $0x90] sm:$0xff] %v813
    %878 = vst [vmem:[#allocation2 + $0x98] sm:$0xff] %v814
    %879 = vst [vmem:[#allocation2 + $0xa0] sm:$0xff] %v815
    %880 = vst [vmem:[#allocation2 + $0xa8] sm:$0xff] %v816
    %881 = vst [vmem:[#allocation2 + $0xb0] sm:$0xff] %v817
    %882 = vst [vmem:[#allocation2 + $0xb8] sm:$0xff] %v818
    %883 = vst [vmem:[#allocation2 + $0xc0] sm:$0xff] %v819
    %884 = vst [vmem:[#allocation2 + $0xc8] sm:$0xff] %v820
    %885 = vst [vmem:[#allocation2 + $0xd0] sm:$0xff] %v821
    %886 = vst [vmem:[#allocation2 + $0xd8] sm:$0xff] %v822
    %887 = vst [vmem:[#allocation2 + $0xe0] sm:$0xff] %v823
    %888 = vst [vmem:[#allocation2 + $0xe8] sm:$0xff] %v824
    %889 = vst [vmem:[#allocation2 + $0xf0] sm:$0xff] %v825
    %890 = vst [vmem:[#allocation2 + $0xf8] sm:$0xff] %v826
    %891 = vst [vmem:[#allocation2 + $0x100] sm:$0xff] %v827
    %892 = vst [vmem:[#allocation2 + $0x108] sm:$0xff] %v828
    %893 = vst [vmem:[#allocation2 + $0x110] sm:$0xff] %v829
    %894 = vst [vmem:[#allocation2 + $0x118] sm:$0xff] %v830
    %895 = vst [vmem:[#allocation2 + $0x120] sm:$0xff] %v831
    %896 = vst [vmem:[#allocation2 + $0x128] sm:$0xff] %v832
    %897 = vst [vmem:[#allocation2 + $0x130] sm:$0xff] %v833
    %898 = vst [vmem:[#allocation2 + $0x138] sm:$0xff] %v834
    %899 = vst [vmem:[#allocation2 + $0x140] sm:$0xff] %v835
    %900 = vst [vmem:[#allocation2 + $0x148] sm:$0xff] %v836
    %901 = vst [vmem:[#allocation2 + $0x150] sm:$0xff] %v837
    %902 = vst [vmem:[#allocation2 + $0x158] sm:$0xff] %v838
    %903 = vst [vmem:[#allocation2 + $0x160] sm:$0xff] %v839
    %904 = vst [vmem:[#allocation2 + $0x168] sm:$0xff] %v840
    %905 = vst [vmem:[#allocation2 + $0x170] sm:$0xff] %v841
    %906 = vst [vmem:[#allocation2 + $0x178] sm:$0xff] %v842
    %907 = vst [vmem:[#allocation2 + $0x180] sm:$0xff] %v843
    %908 = vst [vmem:[#allocation2 + $0x188] sm:$0xff] %v844
    %909 = vst [vmem:[#allocation2 + $0x190] sm:$0xff] %v845
    %910 = vst [vmem:[#allocation2 + $0x198] sm:$0xff] %v846
    %911 = vst [vmem:[#allocation2 + $0x1a0] sm:$0xff] %v847
    %912 = vst [vmem:[#allocation2 + $0x1a8] sm:$0xff] %v848
    %913 = vst [vmem:[#allocation2 + $0x1b0] sm:$0xff] %v849
    %914 = vst [vmem:[#allocation2 + $0x1b8] sm:$0xff] %v850
    %915 = vst [vmem:[#allocation2 + $0x1c0] sm:$0xff] %v851
    %916 = vst [vmem:[#allocation2 + $0x1c8] sm:$0xff] %v852
    %917 = vst [vmem:[#allocation2 + $0x1d0] sm:$0xff] %v853
    %918 = vst [vmem:[#allocation2 + $0x1d8] sm:$0xff] %v854
    %919 = vst [vmem:[#allocation2 + $0x1e0] sm:$0xff] %v855
    %920 = vst [vmem:[#allocation2 + $0x1e8] sm:$0xff] %v856
    %921 = vst [vmem:[#allocation2 + $0x1f0] sm:$0xff] %v857
    %922 = vst [vmem:[#allocation2 + $0x1f8] sm:$0xff] %v858
    // Predicated region
    $region14: #{tpu_custom_call.1} parent=1 // pred_check
      %p923 = pneg %p16
    $region15: #{tpu_custom_call.1} parent=1 // pred_check_branch
      %925 = sbr.rel (%p923) target = $region17
    $region16: #{tpu_custom_call.1} parent=1 // pred_region
      %v926 = vld [vmem:[#allocation2] sm:$0xff]
      %v927 = vld [vmem:[#allocation2 + $0x8] sm:$0xff]
      %v928 = vld [vmem:[#allocation2 + $0x10] sm:$0xff]
      %v929 = vld [vmem:[#allocation2 + $0x18] sm:$0xff]
      %v930 = vld [vmem:[#allocation2 + $0x20] sm:$0xff]
      %v931 = vld [vmem:[#allocation2 + $0x28] sm:$0xff]
      %v932 = vld [vmem:[#allocation2 + $0x30] sm:$0xff]
      %v933 = vld [vmem:[#allocation2 + $0x38] sm:$0xff]
      %v934 = vld [vmem:[#allocation2 + $0x40] sm:$0xff]
      %v935 = vld [vmem:[#allocation2 + $0x48] sm:$0xff]
      %v936 = vld [vmem:[#allocation2 + $0x50] sm:$0xff]
      %v937 = vld [vmem:[#allocation2 + $0x58] sm:$0xff]
      %v938 = vld [vmem:[#allocation2 + $0x60] sm:$0xff]
      %v939 = vld [vmem:[#allocation2 + $0x68] sm:$0xff]
      %v940 = vld [vmem:[#allocation2 + $0x70] sm:$0xff]
      %v941 = vld [vmem:[#allocation2 + $0x78] sm:$0xff]
      %v942 = vld [vmem:[#allocation2 + $0x80] sm:$0xff]
      %v943 = vld [vmem:[#allocation2 + $0x88] sm:$0xff]
      %v944 = vld [vmem:[#allocation2 + $0x90] sm:$0xff]
      %v945 = vld [vmem:[#allocation2 + $0x98] sm:$0xff]
      %v946 = vld [vmem:[#allocation2 + $0xa0] sm:$0xff]
      %v947 = vld [vmem:[#allocation2 + $0xa8] sm:$0xff]
      %v948 = vld [vmem:[#allocation2 + $0xb0] sm:$0xff]
      %v949 = vld [vmem:[#allocation2 + $0xb8] sm:$0xff]
      %v950 = vld [vmem:[#allocation2 + $0xc0] sm:$0xff]
      %v951 = vld [vmem:[#allocation2 + $0xc8] sm:$0xff]
      %v952 = vld [vmem:[#allocation2 + $0xd0] sm:$0xff]
      %v953 = vld [vmem:[#allocation2 + $0xd8] sm:$0xff]
      %v954 = vld [vmem:[#allocation2 + $0xe0] sm:$0xff]
      %v955 = vld [vmem:[#allocation2 + $0xe8] sm:$0xff]
      %v956 = vld [vmem:[#allocation2 + $0xf0] sm:$0xff]
      %v957 = vld [vmem:[#allocation2 + $0xf8] sm:$0xff]
      %v958 = vld [vmem:[#allocation2 + $0x100] sm:$0xff]
      %v959 = vld [vmem:[#allocation2 + $0x108] sm:$0xff]
      %v960 = vld [vmem:[#allocation2 + $0x110] sm:$0xff]
      %v961 = vld [vmem:[#allocation2 + $0x118] sm:$0xff]
      %v962 = vld [vmem:[#allocation2 + $0x120] sm:$0xff]
      %v963 = vld [vmem:[#allocation2 + $0x128] sm:$0xff]
      %v964 = vld [vmem:[#allocation2 + $0x130] sm:$0xff]
      %v965 = vld [vmem:[#allocation2 + $0x138] sm:$0xff]
      %v966 = vld [vmem:[#allocation2 + $0x140] sm:$0xff]
      %v967 = vld [vmem:[#allocation2 + $0x148] sm:$0xff]
      %v968 = vld [vmem:[#allocation2 + $0x150] sm:$0xff]
      %v969 = vld [vmem:[#allocation2 + $0x158] sm:$0xff]
      %v970 = vld [vmem:[#allocation2 + $0x160] sm:$0xff]
      %v971 = vld [vmem:[#allocation2 + $0x168] sm:$0xff]
      %v972 = vld [vmem:[#allocation2 + $0x170] sm:$0xff]
      %v973 = vld [vmem:[#allocation2 + $0x178] sm:$0xff]
      %v974 = vld [vmem:[#allocation2 + $0x180] sm:$0xff]
      %v975 = vld [vmem:[#allocation2 + $0x188] sm:$0xff]
      %v976 = vld [vmem:[#allocation2 + $0x190] sm:$0xff]
      %v977 = vld [vmem:[#allocation2 + $0x198] sm:$0xff]
      %v978 = vld [vmem:[#allocation2 + $0x1a0] sm:$0xff]
      %v979 = vld [vmem:[#allocation2 + $0x1a8] sm:$0xff]
      %v980 = vld [vmem:[#allocation2 + $0x1b0] sm:$0xff]
      %v981 = vld [vmem:[#allocation2 + $0x1b8] sm:$0xff]
      %v982 = vld [vmem:[#allocation2 + $0x1c0] sm:$0xff]
      %v983 = vld [vmem:[#allocation2 + $0x1c8] sm:$0xff]
      %v984 = vld [vmem:[#allocation2 + $0x1d0] sm:$0xff]
      %v985 = vld [vmem:[#allocation2 + $0x1d8] sm:$0xff]
      %v986 = vld [vmem:[#allocation2 + $0x1e0] sm:$0xff]
      %v987 = vld [vmem:[#allocation2 + $0x1e8] sm:$0xff]
      %v988 = vld [vmem:[#allocation2 + $0x1f0] sm:$0xff]
      %v989 = vld [vmem:[#allocation2 + $0x1f8] sm:$0xff]
      %990 = vst [vmem:[#allocation3] sm:$0xff] %v926
      %991 = vst [vmem:[#allocation3 + $0x8] sm:$0xff] %v927
      %992 = vst [vmem:[#allocation3 + $0x10] sm:$0xff] %v928
      %993 = vst [vmem:[#allocation3 + $0x18] sm:$0xff] %v929
      %994 = vst [vmem:[#allocation3 + $0x20] sm:$0xff] %v930
      %995 = vst [vmem:[#allocation3 + $0x28] sm:$0xff] %v931
      %996 = vst [vmem:[#allocation3 + $0x30] sm:$0xff] %v932
      %997 = vst [vmem:[#allocation3 + $0x38] sm:$0xff] %v933
      %998 = vst [vmem:[#allocation3 + $0x40] sm:$0xff] %v934
      %999 = vst [vmem:[#allocation3 + $0x48] sm:$0xff] %v935
      %1000 = vst [vmem:[#allocation3 + $0x50] sm:$0xff] %v936
      %1001 = vst [vmem:[#allocation3 + $0x58] sm:$0xff] %v937
      %1002 = vst [vmem:[#allocation3 + $0x60] sm:$0xff] %v938
      %1003 = vst [vmem:[#allocation3 + $0x68] sm:$0xff] %v939
      %1004 = vst [vmem:[#allocation3 + $0x70] sm:$0xff] %v940
      %1005 = vst [vmem:[#allocation3 + $0x78] sm:$0xff] %v941
      %1006 = vst [vmem:[#allocation3 + $0x80] sm:$0xff] %v942
      %1007 = vst [vmem:[#allocation3 + $0x88] sm:$0xff] %v943
      %1008 = vst [vmem:[#allocation3 + $0x90] sm:$0xff] %v944
      %1009 = vst [vmem:[#allocation3 + $0x98] sm:$0xff] %v945
      %1010 = vst [vmem:[#allocation3 + $0xa0] sm:$0xff] %v946
      %1011 = vst [vmem:[#allocation3 + $0xa8] sm:$0xff] %v947
      %1012 = vst [vmem:[#allocation3 + $0xb0] sm:$0xff] %v948
      %1013 = vst [vmem:[#allocation3 + $0xb8] sm:$0xff] %v949
      %1014 = vst [vmem:[#allocation3 + $0xc0] sm:$0xff] %v950
      %1015 = vst [vmem:[#allocation3 + $0xc8] sm:$0xff] %v951
      %1016 = vst [vmem:[#allocation3 + $0xd0] sm:$0xff] %v952
      %1017 = vst [vmem:[#allocation3 + $0xd8] sm:$0xff] %v953
      %1018 = vst [vmem:[#allocation3 + $0xe0] sm:$0xff] %v954
      %1019 = vst [vmem:[#allocation3 + $0xe8] sm:$0xff] %v955
      %1020 = vst [vmem:[#allocation3 + $0xf0] sm:$0xff] %v956
      %1021 = vst [vmem:[#allocation3 + $0xf8] sm:$0xff] %v957
      %1022 = vst [vmem:[#allocation3 + $0x100] sm:$0xff] %v958
      %1023 = vst [vmem:[#allocation3 + $0x108] sm:$0xff] %v959
      %1024 = vst [vmem:[#allocation3 + $0x110] sm:$0xff] %v960
      %1025 = vst [vmem:[#allocation3 + $0x118] sm:$0xff] %v961
      %1026 = vst [vmem:[#allocation3 + $0x120] sm:$0xff] %v962
      %1027 = vst [vmem:[#allocation3 + $0x128] sm:$0xff] %v963
      %1028 = vst [vmem:[#allocation3 + $0x130] sm:$0xff] %v964
      %1029 = vst [vmem:[#allocation3 + $0x138] sm:$0xff] %v965
      %1030 = vst [vmem:[#allocation3 + $0x140] sm:$0xff] %v966
      %1031 = vst [vmem:[#allocation3 + $0x148] sm:$0xff] %v967
      %1032 = vst [vmem:[#allocation3 + $0x150] sm:$0xff] %v968
      %1033 = vst [vmem:[#allocation3 + $0x158] sm:$0xff] %v969
      %1034 = vst [vmem:[#allocation3 + $0x160] sm:$0xff] %v970
      %1035 = vst [vmem:[#allocation3 + $0x168] sm:$0xff] %v971
      %1036 = vst [vmem:[#allocation3 + $0x170] sm:$0xff] %v972
      %1037 = vst [vmem:[#allocation3 + $0x178] sm:$0xff] %v973
      %1038 = vst [vmem:[#allocation3 + $0x180] sm:$0xff] %v974
      %1039 = vst [vmem:[#allocation3 + $0x188] sm:$0xff] %v975
      %1040 = vst [vmem:[#allocation3 + $0x190] sm:$0xff] %v976
      %1041 = vst [vmem:[#allocation3 + $0x198] sm:$0xff] %v977
      %1042 = vst [vmem:[#allocation3 + $0x1a0] sm:$0xff] %v978
      %1043 = vst [vmem:[#allocation3 + $0x1a8] sm:$0xff] %v979
      %1044 = vst [vmem:[#allocation3 + $0x1b0] sm:$0xff] %v980
      %1045 = vst [vmem:[#allocation3 + $0x1b8] sm:$0xff] %v981
      %1046 = vst [vmem:[#allocation3 + $0x1c0] sm:$0xff] %v982
      %1047 = vst [vmem:[#allocation3 + $0x1c8] sm:$0xff] %v983
      %1048 = vst [vmem:[#allocation3 + $0x1d0] sm:$0xff] %v984
      %1049 = vst [vmem:[#allocation3 + $0x1d8] sm:$0xff] %v985
      %1050 = vst [vmem:[#allocation3 + $0x1e0] sm:$0xff] %v986
      %1051 = vst [vmem:[#allocation3 + $0x1e8] sm:$0xff] %v987
      %1052 = vst [vmem:[#allocation3 + $0x1f0] sm:$0xff] %v988
      %1053 = vst [vmem:[#allocation3 + $0x1f8] sm:$0xff] %v989
      %v1054 = vadd.f32 %v926, %v927
      %v1055 = vadd.f32 %v1054, %v928
      %v1056 = vadd.f32 %v1055, %v929
      %v1057 = vadd.f32 %v1056, %v930
      %v1058 = vadd.f32 %v1057, %v931
      %v1059 = vadd.f32 %v1058, %v932
      %v1060 = vadd.f32 %v1059, %v933
      %v1061 = vadd.f32 %v1060, %v934
      %v1062 = vadd.f32 %v1061, %v935
      %v1063 = vadd.f32 %v1062, %v936
      %v1064 = vadd.f32 %v1063, %v937
      %v1065 = vadd.f32 %v1064, %v938
      %v1066 = vadd.f32 %v1065, %v939
      %v1067 = vadd.f32 %v1066, %v940
      %v1068 = vadd.f32 %v1067, %v941
      %v1069 = vadd.f32 %v1068, %v942
      %v1070 = vadd.f32 %v1069, %v943
      %v1071 = vadd.f32 %v1070, %v944
      %v1072 = vadd.f32 %v1071, %v945
      %v1073 = vadd.f32 %v1072, %v946
      %v1074 = vadd.f32 %v1073, %v947
      %v1075 = vadd.f32 %v1074, %v948
      %v1076 = vadd.f32 %v1075, %v949
      %v1077 = vadd.f32 %v1076, %v950
      %v1078 = vadd.f32 %v1077, %v951
      %v1079 = vadd.f32 %v1078, %v952
      %v1080 = vadd.f32 %v1079, %v953
      %v1081 = vadd.f32 %v1080, %v954
      %v1082 = vadd.f32 %v1081, %v955
      %v1083 = vadd.f32 %v1082, %v956
      %v1084 = vadd.f32 %v1083, %v957
      %v1085 = vadd.f32 %v1084, %v958
      %v1086 = vadd.f32 %v1085, %v959
      %v1087 = vadd.f32 %v1086, %v960
      %v1088 = vadd.f32 %v1087, %v961
      %v1089 = vadd.f32 %v1088, %v962
      %v1090 = vadd.f32 %v1089, %v963
      %v1091 = vadd.f32 %v1090, %v964
      %v1092 = vadd.f32 %v1091, %v965
      %v1093 = vadd.f32 %v1092, %v966
      %v1094 = vadd.f32 %v1093, %v967
      %v1095 = vadd.f32 %v1094, %v968
      %v1096 = vadd.f32 %v1095, %v969
      %v1097 = vadd.f32 %v1096, %v970
      %v1098 = vadd.f32 %v1097, %v971
      %v1099 = vadd.f32 %v1098, %v972
      %v1100 = vadd.f32 %v1099, %v973
      %v1101 = vadd.f32 %v1100, %v974
      %v1102 = vadd.f32 %v1101, %v975
      %v1103 = vadd.f32 %v1102, %v976
      %v1104 = vadd.f32 %v1103, %v977
      %v1105 = vadd.f32 %v1104, %v978
      %v1106 = vadd.f32 %v1105, %v979
      %v1107 = vadd.f32 %v1106, %v980
      %v1108 = vadd.f32 %v1107, %v981
      %v1109 = vadd.f32 %v1108, %v982
      %v1110 = vadd.f32 %v1109, %v983
      %v1111 = vadd.f32 %v1110, %v984
      %v1112 = vadd.f32 %v1111, %v985
      %v1113 = vadd.f32 %v1112, %v986
      %v1114 = vadd.f32 %v1113, %v987
      %v1115 = vadd.f32 %v1114, %v988
      %v1116 = vadd.f32 %v1115, %v989
      %v1117 = vrot.slane %v1116, 4
      %v1118 = vadd.f32 %v1116, %v1117
      %v1119 = vrot.slane %v1118, 2
      %v1120 = vadd.f32 %v1118, %v1119
      %v1121 = vrot.slane %v1120, 1
      %v1122 = vadd.f32 %v1120, %v1121
      %v1123 = vmul.f32 %v926, %v926
      %v1124 = vmul.f32 %v927, %v927
      %v1125 = vmul.f32 %v928, %v928
      %v1126 = vmul.f32 %v929, %v929
      %v1127 = vmul.f32 %v930, %v930
      %v1128 = vmul.f32 %v931, %v931
      %v1129 = vmul.f32 %v932, %v932
      %v1130 = vmul.f32 %v933, %v933
      %v1131 = vmul.f32 %v934, %v934
      %v1132 = vmul.f32 %v935, %v935
      %v1133 = vmul.f32 %v936, %v936
      %v1134 = vmul.f32 %v937, %v937
      %v1135 = vmul.f32 %v938, %v938
      %v1136 = vmul.f32 %v939, %v939
      %v1137 = vmul.f32 %v940, %v940
      %v1138 = vmul.f32 %v941, %v941
      %v1139 = vmul.f32 %v942, %v942
      %v1140 = vmul.f32 %v943, %v943
      %v1141 = vmul.f32 %v944, %v944
      %v1142 = vmul.f32 %v945, %v945
      %v1143 = vmul.f32 %v946, %v946
      %v1144 = vmul.f32 %v947, %v947
      %v1145 = vmul.f32 %v948, %v948
      %v1146 = vmul.f32 %v949, %v949
      %v1147 = vmul.f32 %v950, %v950
      %v1148 = vmul.f32 %v951, %v951
      %v1149 = vmul.f32 %v952, %v952
      %v1150 = vmul.f32 %v953, %v953
      %v1151 = vmul.f32 %v954, %v954
      %v1152 = vmul.f32 %v955, %v955
      %v1153 = vmul.f32 %v956, %v956
      %v1154 = vmul.f32 %v957, %v957
      %v1155 = vmul.f32 %v958, %v958
      %v1156 = vmul.f32 %v959, %v959
      %v1157 = vmul.f32 %v960, %v960
      %v1158 = vmul.f32 %v961, %v961
      %v1159 = vmul.f32 %v962, %v962
      %v1160 = vmul.f32 %v963, %v963
      %v1161 = vmul.f32 %v964, %v964
      %v1162 = vmul.f32 %v965, %v965
      %v1163 = vmul.f32 %v966, %v966
      %v1164 = vmul.f32 %v967, %v967
      %v1165 = vmul.f32 %v968, %v968
      %v1166 = vmul.f32 %v969, %v969
      %v1167 = vmul.f32 %v970, %v970
      %v1168 = vmul.f32 %v971, %v971
      %v1169 = vmul.f32 %v972, %v972
      %v1170 = vmul.f32 %v973, %v973
      %v1171 = vmul.f32 %v974, %v974
      %v1172 = vmul.f32 %v975, %v975
      %v1173 = vmul.f32 %v976, %v976
      %v1174 = vmul.f32 %v977, %v977
      %v1175 = vmul.f32 %v978, %v978
      %v1176 = vmul.f32 %v979, %v979
      %v1177 = vmul.f32 %v980, %v980
      %v1178 = vmul.f32 %v981, %v981
      %v1179 = vmul.f32 %v982, %v982
      %v1180 = vmul.f32 %v983, %v983
      %v1181 = vmul.f32 %v984, %v984
      %v1182 = vmul.f32 %v985, %v985
      %v1183 = vmul.f32 %v986, %v986
      %v1184 = vmul.f32 %v987, %v987
      %v1185 = vmul.f32 %v988, %v988
      %v1186 = vmul.f32 %v989, %v989
      %v1187 = vadd.f32 %v1123, %v1124
      %v1188 = vadd.f32 %v1187, %v1125
      %v1189 = vadd.f32 %v1188, %v1126
      %v1190 = vadd.f32 %v1189, %v1127
      %v1191 = vadd.f32 %v1190, %v1128
      %v1192 = vadd.f32 %v1191, %v1129
      %v1193 = vadd.f32 %v1192, %v1130
      %v1194 = vadd.f32 %v1193, %v1131
      %v1195 = vadd.f32 %v1194, %v1132
      %v1196 = vadd.f32 %v1195, %v1133
      %v1197 = vadd.f32 %v1196, %v1134
      %v1198 = vadd.f32 %v1197, %v1135
      %v1199 = vadd.f32 %v1198, %v1136
      %v1200 = vadd.f32 %v1199, %v1137
      %v1201 = vadd.f32 %v1200, %v1138
      %v1202 = vadd.f32 %v1201, %v1139
      %v1203 = vadd.f32 %v1202, %v1140
      %v1204 = vadd.f32 %v1203, %v1141
      %v1205 = vadd.f32 %v1204, %v1142
      %v1206 = vadd.f32 %v1205, %v1143
      %v1207 = vadd.f32 %v1206, %v1144
      %v1208 = vadd.f32 %v1207, %v1145
      %v1209 = vadd.f32 %v1208, %v1146
      %v1210 = vadd.f32 %v1209, %v1147
      %v1211 = vadd.f32 %v1210, %v1148
      %v1212 = vadd.f32 %v1211, %v1149
      %v1213 = vadd.f32 %v1212, %v1150
      %v1214 = vadd.f32 %v1213, %v1151
      %v1215 = vadd.f32 %v1214, %v1152
      %v1216 = vadd.f32 %v1215, %v1153
      %v1217 = vadd.f32 %v1216, %v1154
      %v1218 = vadd.f32 %v1217, %v1155
      %v1219 = vadd.f32 %v1218, %v1156
      %v1220 = vadd.f32 %v1219, %v1157
      %v1221 = vadd.f32 %v1220, %v1158
      %v1222 = vadd.f32 %v1221, %v1159
      %v1223 = vadd.f32 %v1222, %v1160
      %v1224 = vadd.f32 %v1223, %v1161
      %v1225 = vadd.f32 %v1224, %v1162
      %v1226 = vadd.f32 %v1225, %v1163
      %v1227 = vadd.f32 %v1226, %v1164
      %v1228 = vadd.f32 %v1227, %v1165
      %v1229 = vadd.f32 %v1228, %v1166
      %v1230 = vadd.f32 %v1229, %v1167
      %v1231 = vadd.f32 %v1230, %v1168
      %v1232 = vadd.f32 %v1231, %v1169
      %v1233 = vadd.f32 %v1232, %v1170
      %v1234 = vadd.f32 %v1233, %v1171
      %v1235 = vadd.f32 %v1234, %v1172
      %v1236 = vadd.f32 %v1235, %v1173
      %v1237 = vadd.f32 %v1236, %v1174
      %v1238 = vadd.f32 %v1237, %v1175
      %v1239 = vadd.f32 %v1238, %v1176
      %v1240 = vadd.f32 %v1239, %v1177
      %v1241 = vadd.f32 %v1240, %v1178
      %v1242 = vadd.f32 %v1241, %v1179
      %v1243 = vadd.f32 %v1242, %v1180
      %v1244 = vadd.f32 %v1243, %v1181
      %v1245 = vadd.f32 %v1244, %v1182
      %v1246 = vadd.f32 %v1245, %v1183
      %v1247 = vadd.f32 %v1246, %v1184
      %v1248 = vadd.f32 %v1247, %v1185
      %v1249 = vadd.f32 %v1248, %v1186
      %v1250 = vrot.slane %v1249, 4
      %v1251 = vadd.f32 %v1249, %v1250
      %v1252 = vrot.slane %v1251, 2
      %v1253 = vadd.f32 %v1251, %v1252
      %v1254 = vrot.slane %v1253, 1
      %v1255 = vadd.f32 %v1253, %v1254
      %1256 = vst [vmem:[#allocation5] sm:$0xff] %v1122
      %1257 = vst [vmem:[#allocation7] sm:$0xff] %v1255
    $region17: #{tpu_custom_call.1} parent=1 // pred_fallthru
      _
    // Predicated region
    $region18: #{tpu_custom_call.1} parent=1 // pred_check
      _
    $region19: #{tpu_custom_call.1} parent=1 // pred_check_branch
      %1259 = sbr.rel (0) target = $region21
    $region20: #{tpu_custom_call.1} parent=1 // pred_region
      %s1261 = ssub.s32 8192, 8192
      %1262 = vsyncadd [#allocation4], %s1261
      %s1263 = sshll.u32 [#allocation3], 4
      %s1264 = int_to_ptr.vmem [resolvable:$true] %s1263
      %1269 = dma.vmem_to_hbm [thread:$0]  %s1264, 8192, %s2, [#allocation4], 128, 128, 8
    $region21: #{tpu_custom_call.1} parent=1 // pred_fallthru
      _
    // Predicated region
    $region22: #{tpu_custom_call.1} parent=1 // pred_check
      _
    $region23: #{tpu_custom_call.1} parent=1 // pred_check_branch
      %1271 = sbr.rel (0) target = $region25
    $region24: #{tpu_custom_call.1} parent=1 // pred_region
      %s1273 = ssub.s32 128, 128
      %1274 = vsyncadd [#allocation6], %s1273
      %s1276 = sshll.u32 [#allocation5], 4
      %s1277 = int_to_ptr.vmem [resolvable:$true] %s1276
      %1279 = dma.vmem_to_hbm [thread:$0]  %s1277, 128, %s3, [#allocation6]
    $region25: #{tpu_custom_call.1} parent=1 // pred_fallthru
      _
    // Predicated region
    $region26: #{tpu_custom_call.1} parent=1 // pred_check
      _
    $region27: #{tpu_custom_call.1} parent=1 // pred_check_branch
      %1281 = sbr.rel (0) target = $region29
    $region28: #{tpu_custom_call.1} parent=1 // pred_region
      %s1283 = ssub.s32 128, 128
      %1284 = vsyncadd [#allocation6], %s1283
      %s1286 = sshll.u32 [#allocation7], 4
      %s1287 = int_to_ptr.vmem [resolvable:$true] %s1286
      %1289 = dma.vmem_to_hbm [thread:$0]  %s1287, 128, %s4, [#allocation6]
    $region29: #{tpu_custom_call.1} parent=1 // pred_fallthru
      _
    // Predicated region
    $region30: #{tpu_custom_call.1} parent=1 // pred_check
      _
    $region31: #{tpu_custom_call.1} parent=1 // pred_check_branch
      %1291 = sbr.rel (0) target = $region33
    $region32: #{tpu_custom_call.1} parent=1 // pred_region
      %1292 = dma.done [#allocation4], 8192
    $region33: #{tpu_custom_call.1} parent=1 // pred_fallthru
      _
    // Predicated region
    $region34: #{tpu_custom_call.1} parent=1 // pred_check
      _
    $region35: #{tpu_custom_call.1} parent=1 // pred_check_branch
      %1294 = sbr.rel (0) target = $region37
    $region36: #{tpu_custom_call.1} parent=1 // pred_region
      %1295 = dma.done [#allocation6], 128
    $region37: #{tpu_custom_call.1} parent=1 // pred_fallthru
      _
    // Predicated region
    $region38: #{tpu_custom_call.1} parent=1 // pred_check
      _
    $region39: #{tpu_custom_call.1} parent=1 // pred_check_branch
      %1297 = sbr.rel (0) target = $region41
    $region40: #{tpu_custom_call.1} parent=1 // pred_region
      %1298 = dma.done [#allocation6], 128
    $region41: #{tpu_custom_call.1} parent=1 // pred_fallthru
      _
    %1299 = vsyncpa [#allocation4], 1
    %1300 = vsyncpa [#allocation6], 1

</llo_original>
